<compile_context>
chip_gen: v6e
topology: v6e:2x2x1
jax: 0.10.0
libtpu: 0.0.40
codegen_flags: <defaults>
</compile_context>

<pallas_src>
import functools

import numpy as np
import jax
import jax.numpy as jnp
from jax.experimental import pallas as pl
from jax.experimental.pallas import tpu as pltpu


# ---------------------------------------------------------------------------
# Model constants (synthetic CNN implied by FeatureExtractor)
# ---------------------------------------------------------------------------
CIN, C1, C2 = 4, 8, 16
H1 = W1 = 16
H2 = W2 = 8
H3 = W3 = 4
HW1, HW2, HW3 = H1 * W1, H2 * W2, H3 * W3        # 256, 64, 16
FEAT = C2 * HW3                                  # 256  (dense in-features)
NUM_CLASSES = 10
KPAD = 128                                       # lane-padded logits rows
MAX_IMAGES_PER_STEP = 8                          # caps B^2 constants (v7x VMEM)

_MODULE_ORDER = ("conv1", "pool1", "conv2", "pool2")
_ACT_GEOM = {                                    # (C, H, W) of each module output
    "conv1": (C1, H1, W1),
    "pool1": (C1, H2, W2),
    "conv2": (C2, H2, W2),
    "pool2": (C2, H3, W3),
}


# ---------------------------------------------------------------------------
# In-kernel helpers (pure value functions traced inside the Pallas kernel)
# ---------------------------------------------------------------------------
def _lane_shift(x, d):
    """out[:, l] = x[:, (l + d) % L].  Static lane slices + one concat; invalid
    (border / cross-image / wrapped) lanes are zeroed by the precomputed masks.
    pltpu.roll(axis=-1) is the XLU-native alternative for the same shift."""
    L = x.shape[-1]
    d %= L
    if d == 0:
        return x
    return jnp.concatenate([x[:, d:], x[:, :d]], axis=1)


def _conv3x3_relu(x, ww, wmat, bias, tap_mask):
    """3x3 'same' conv + bias + ReLU on a (Cin, B*hh*ww) lane-batched tile.

    wmat: (Cout, 9*Cin) im2col weights, columns ordered (kh, kw, cin).
    tap_mask: (9*Cin, B*hh*ww) precomputed 0/1 source-validity mask.
    """
    taps = [_lane_shift(x, dh * ww + dw)
            for dh in (-1, 0, 1) for dw in (-1, 0, 1)]
    patches = jnp.concatenate(taps, axis=0) * tap_mask       # (9*Cin, B*hh*ww)
    y = jnp.dot(wmat, patches, preferred_element_type=jnp.float32)
    return jnp.maximum(y + bias, 0.0)


def _pool_max(y, ww):
    """2x2 window maxima; valid results sit at even-(h, w) lanes of each image."""
    m = jnp.maximum(y, _lane_shift(y, 1))     # pair along w
    return jnp.maximum(m, _lane_shift(m, ww))  # pair along h


# ---------------------------------------------------------------------------
# Host-side constant builders (all depend only on the per-step image batch B)
# ---------------------------------------------------------------------------
def _tap_masks(hh, ww, cin, batch):
    """(9*cin, batch*hh*ww) 0/1 masks: 1 where the tap's source pixel is inside
    the image (uses lane % (hh*ww), so cross-image / wrap lanes are always 0)."""
    L = batch * hh * ww
    lane = np.arange(L)
    r = (lane % (hh * ww)) // ww
    c = lane % ww
    rows = []
    for dh in (-1, 0, 1):
        for dw in (-1, 0, 1):
            ok = ((r + dh >= 0) & (r + dh < hh) &
                  (c + dw >= 0) & (c + dw < ww)).astype(np.float32)
            rows.append(np.broadcast_to(ok, (cin, L)))
    return np.concatenate(rows, axis=0)


def _pool_select(hh, ww):
    """One-hot (hh*ww, hh*ww//4) matrix picking the even-(h, w) lanes."""
    hp, wp = hh // 2, ww // 2
    sel = np.zeros((hh * ww, hp * wp), np.float32)
    for i in range(hp):
        for j in range(wp):
            sel[(2 * i) * ww + 2 * j, i * wp + j] = 1.0
    return sel


def _build_constants(batch):
    eye_b = np.eye(batch, dtype=np.float32)
    consts = dict(
        # conv border masks (already replicated per input channel)
        mask1=_tap_masks(H1, W1, CIN, batch),
        mask2=_tap_masks(H2, W2, C1, batch),
        # block-diagonal 2x2-maxpool lane compaction (B^2-sized, hence the B cap)
        s1=np.kron(eye_b, _pool_select(H1, W1)),               # (B*256, B*64)
        s2=np.kron(eye_b, _pool_select(H2, W2)),               # (B*64,  B*16)
        # flatten + dense helpers (all exact 0/1 selections)
        rep_e=np.kron(np.eye(C2, dtype=np.float32),
                      np.ones((HW3, 1), np.float32)),          # (FEAT, C2)
        mask_j=np.tile(np.eye(HW3, dtype=np.float32),
                       (C2, batch)),                           # (FEAT, B*16)
        csum_b=np.kron(eye_b, np.ones((HW3, 1), np.float32)),  # (B*16, B)
    )
    return {k: jnp.asarray(v) for k, v in consts.items()}


def _next_pow2(n):
    return 1 << max(int(n) - 1, 0).bit_length()


def _choose_batch(n):
    """Images packed per grid step (along lanes)."""
    b = min(MAX_IMAGES_PER_STEP, _next_pow2(max(int(n), 1)))
    # Prefer >= 2 grid steps once there is enough work per step, so the v7x
    # megacore ("parallel" grid axis) actually has something to split.
    if b > 2 and -(-n // b) < 2:
        b //= 2
    return max(b, 1)


# ---------------------------------------------------------------------------
# Fused forward:  conv1+relu -> pool1 -> conv2+relu -> pool2 -> flatten -> dense
# One grid step == `batch` images packed along the lane axis.
# ---------------------------------------------------------------------------
@functools.lru_cache(maxsize=None)
def _build_forward(requested, n):
    batch = _choose_batch(n)
    steps = -(-n // batch)
    n_pad = steps * batch
    lanes1, lanes2, lanes3 = batch * HW1, batch * HW2, batch * HW3

    def kernel(x_ref, w1_ref, b1_ref, w2_ref, b2_ref, wdt_ref, bdt_ref,
               m1_ref, m2_ref, s1_ref, s2_ref, e_ref, mj_ref, cs_ref,
               *out_refs):
        outs = dict(zip(requested, out_refs[:len(requested)]))
        logits_ref = out_refs[len(requested)]

        x = x_ref[0]                                                # (CIN, B*256)

        y1 = _conv3x3_relu(x, W1, w1_ref[...], b1_ref[...], m1_ref[...])
        if "conv1" in outs:
            outs["conv1"][0] = y1                                   # (C1, B*256)

        p1 = jnp.dot(_pool_max(y1, W1), s1_ref[...],
                     preferred_element_type=jnp.float32)            # (C1, B*64)
        if "pool1" in outs:
            outs["pool1"][0] = p1

        y2 = _conv3x3_relu(p1, W2, w2_ref[...], b2_ref[...], m2_ref[...])
        if "conv2" in outs:
            outs["conv2"][0] = y2                                   # (C2, B*64)

        p2 = jnp.dot(_pool_max(y2, W2), s2_ref[...],
                     preferred_element_type=jnp.float32)            # (C2, B*16)
        if "pool2" in outs:
            outs["pool2"][0] = p2

        # C*H*W flatten (torch .view order) + dense, done purely with matmuls:
        #   rep[c*16+j, :]      = p2[c, :]             (channel replication)
        #   flat_t[c*16+j, b]   = p2[c, b*16+j]        (mask + lane compaction)
        #   logits_t[k, b]      = sum_f wd[f, k] * flat_t[f, b] + bd[k]
        rep = jnp.dot(e_ref[...], p2, preferred_element_type=jnp.float32)
        flat_t = jnp.dot(rep * mj_ref[...], cs_ref[...],
                         preferred_element_type=jnp.float32)        # (FEAT, B)
        logits_ref[0] = (jnp.dot(wdt_ref[...], flat_t,
                                 preferred_element_type=jnp.float32)
                         + bdt_ref[...])                            # (KPAD, B)

    act_lanes = {"conv1": (C1, lanes1), "pool1": (C1, lanes2),
                 "conv2": (C2, lanes2), "pool2": (C2, lanes3)}

    out_shape = tuple(
        jax.ShapeDtypeStruct((steps,) + act_lanes[name], jnp.float32)
        for name in requested
    ) + (jax.ShapeDtypeStruct((steps, KPAD, batch), jnp.float32),)

    out_specs = tuple(
        pl.BlockSpec((1,) + act_lanes[name], lambda i: (i, 0, 0))
        for name in requested
    ) + (pl.BlockSpec((1, KPAD, batch), lambda i: (i, 0, 0)),)

    def const_spec(shape):
        return pl.BlockSpec(shape, lambda i: (0, 0))

    in_specs = [
        pl.BlockSpec((1, CIN, lanes1), lambda i: (i, 0, 0)),   # images
        const_spec((C1, 9 * CIN)), const_spec((C1, 1)),        # conv1 W, b
        const_spec((C2, 9 * C1)), const_spec((C2, 1)),         # conv2 W, b
        const_spec((KPAD, FEAT)), const_spec((KPAD, 1)),       # dense W^T, b
        const_spec((9 * CIN, lanes1)),                         # conv1 tap masks
        const_spec((9 * C1, lanes2)),                          # conv2 tap masks
        const_spec((lanes1, lanes2)),                          # pool1 selection
        const_spec((lanes2, lanes3)),                          # pool2 selection
        const_spec((FEAT, C2)),                                # channel replicate
        const_spec((FEAT, lanes3)),                            # flatten mask
        const_spec((lanes3, batch)),                           # per-image compaction
    ]

    call = pl.pallas_call(
        kernel,
        out_shape=out_shape,
        grid=(steps,),
        in_specs=in_specs,
        out_specs=out_specs,
        compiler_params=pltpu.CompilerParams(
            dimension_semantics=("parallel",),        # v7x: split batch over TCs
            vmem_limit_bytes=32 * 1024 * 1024),
    )

    def forward(x, w1m, b1, w2m, b2, wdt, bdt, m1, m2, s1, s2, e, mj, cs):
        x = x.astype(jnp.float32)
        if n_pad != n:
            x = jnp.concatenate(
                [x, jnp.zeros((n_pad - n,) + x.shape[1:], jnp.float32)], axis=0)
        # NCHW -> per-step lane-batched (steps, C, B*H*W); wrapper-side relayout.
        x_steps = (x.reshape(steps, batch, CIN, HW1)
                   .transpose(0, 2, 1, 3)
                   .reshape(steps, CIN, lanes1))
        outs = call(x_steps, w1m, b1, w2m, b2, wdt, bdt,
                    m1, m2, s1, s2, e, mj, cs)
        acts = []
        for idx, name in enumerate(requested):
            ch, hh, ww = _ACT_GEOM[name]
            a = (outs[idx].reshape(steps, ch, batch, hh, ww)
                 .transpose(0, 2, 1, 3, 4)
                 .reshape(n_pad, ch, hh, ww)[:n])
            acts.append(a)
        logits_t = outs[len(requested)]                       # (steps, KPAD, B)
        logits = (logits_t.transpose(0, 2, 1)
                  .reshape(n_pad, KPAD)[:n, :NUM_CLASSES])
        return acts, logits

    return jax.jit(forward)


# ---------------------------------------------------------------------------
# FeatureExtractor-equivalent wrapper
# ---------------------------------------------------------------------------
class FeatureExtractorPallas:
    """Mirrors FeatureExtractor.__call__ for the synthetic CNN."""

    def __init__(self, params, target_layers):
        self.target_layers = list(target_layers)
        # TODO(synk): register_hook / save_gradient capture *backward* gradients;
        # a forward kernel has no equivalent, so `gradients` stays empty.
        self.gradients = []

        w1 = np.asarray(params["w1"], np.float32)          # (3,3,4,8)  HWIO
        w2 = np.asarray(params["w2"], np.float32)          # (3,3,8,16) HWIO
        wd = np.asarray(params["wd"], np.float32)          # (256,10), C*H*W rows
        # im2col weight matrices (Cout, 9*Cin), columns ordered (kh, kw, cin)
        self.w1m = jnp.asarray(w1.reshape(9 * CIN, C1).T)
        self.w2m = jnp.asarray(w2.reshape(9 * C1, C2).T)
        self.b1 = jnp.asarray(params["b1"], jnp.float32).reshape(C1, 1)
        self.b2 = jnp.asarray(params["b2"], jnp.float32).reshape(C2, 1)
        # dense weight transposed + padded to KPAD logits rows (unpermuted: its
        # rows are already in C*H*W flatten order)
        wdt = np.zeros((KPAD, FEAT), np.float32)
        wdt[:NUM_CLASSES, :] = wd.T
        bdt = np.zeros((KPAD, 1), np.float32)
        bdt[:NUM_CLASSES, 0] = np.asarray(params["bd"], np.float32)
        self.wdt = jnp.asarray(wdt)
        self.bdt = jnp.asarray(bdt)

        self._requested = tuple(m for m in _MODULE_ORDER
                                if m in self.target_layers)
        self._const_cache = {}

    def get_gradients(self):
        return self.gradients

    def _constants(self, batch):
        if batch not in self._const_cache:
            self._const_cache[batch] = _build_constants(batch)
        return self._const_cache[batch]

    def __call__(self, x_nchw):
        self.gradients = []
        n = int(x_nchw.shape[0])
        fwd = _build_forward(self._requested, n)
        c = self._constants(_choose_batch(n))
        acts, logits = fwd(x_nchw, self.w1m, self.b1, self.w2m, self.b2,
                           self.wdt, self.bdt,
                           c["mask1"], c["mask2"], c["s1"], c["s2"],
                           c["rep_e"], c["mask_j"], c["csum_b"])
        return list(acts), logits


# ---------------------------------------------------------------------------
# Deterministic parameter init + pure-JAX reference + demo
# ---------------------------------------------------------------------------
def init_params():
    kw = jax.random.PRNGKey(42)
    k1, k2, k3, k4, k5, k6 = jax.random.split(kw, 6)
    return {
        "w1": 0.1 * jax.random.normal(k1, (3, 3, CIN, C1), jnp.float32),
        "b1": 0.1 * jax.random.normal(k2, (C1,), jnp.float32),
        "w2": 0.1 * jax.random.normal(k3, (3, 3, C1, C2), jnp.float32),
        "b2": 0.1 * jax.random.normal(k4, (C2,), jnp.float32),
        "wd": 0.05 * jax.random.normal(k5, (FEAT, NUM_CLASSES), jnp.float32),
        "bd": 0.05 * jax.random.normal(k6, (NUM_CLASSES,), jnp.float32),
    }


def _reference_forward(x, params):
    """Pure-JAX (XLA) reference matching the PyTorch module semantics."""
    dn = ("NCHW", "HWIO", "NCHW")
    y1 = jax.lax.conv_general_dilated(x, params["w1"], (1, 1),
                                      ((1, 1), (1, 1)), dimension_numbers=dn)
    y1 = jnp.maximum(y1 + params["b1"].reshape(1, -1, 1, 1), 0.0)
    p1 = jax.lax.reduce_window(y1, -jnp.inf, jax.lax.max,
                               (1, 1, 2, 2), (1, 1, 2, 2), "VALID")
    y2 = jax.lax.conv_general_dilated(p1, params["w2"], (1, 1),
                                      ((1, 1), (1, 1)), dimension_numbers=dn)
    y2 = jnp.maximum(y2 + params["b2"].reshape(1, -1, 1, 1), 0.0)
    p2 = jax.lax.reduce_window(y2, -jnp.inf, jax.lax.max,
                               (1, 1, 2, 2), (1, 1, 2, 2), "VALID")
    flat = p2.reshape(p2.shape[0], -1)                 # C*H*W flatten (NCHW)
    return y2, flat @ params["wd"] + params["bd"]


if __name__ == "__main__":
    x = jax.random.normal(jax.random.PRNGKey(0), (2, CIN, H1, W1), jnp.float32)

    params = init_params()
    extractor = FeatureExtractorPallas(params, target_layers=["conv2"])

    target_activations, logits = extractor(x)
    logits = jax.block_until_ready(logits)
    for a in target_activations:
        jax.block_until_ready(a)

    assert logits.shape == (2, NUM_CLASSES)
    assert target_activations[0].shape == (2, C2, H2, W2)   # NCHW conv2 activation

    ref_act2, ref_logits = _reference_forward(x, params)
    np.testing.assert_allclose(np.asarray(target_activations[0]),
                               np.asarray(ref_act2), rtol=1e-4, atol=1e-4)
    np.testing.assert_allclose(np.asarray(logits), np.asarray(ref_logits),
                               rtol=1e-4, atol=1e-4)
    print("KERNEL_OK")
</pallas_src>

<mosaic_0001>
module attributes {stable_mosaic.version = 11 : i64} {
  func.func @kernel(%arg0: i32, %arg1: memref<1x4x512xf32, #tpu.memory_space<vmem>>, %arg2: memref<8x36xf32, #tpu.memory_space<vmem>>, %arg3: memref<8x1xf32, #tpu.memory_space<vmem>>, %arg4: memref<16x72xf32, #tpu.memory_space<vmem>>, %arg5: memref<16x1xf32, #tpu.memory_space<vmem>>, %arg6: memref<128x256xf32, #tpu.memory_space<vmem>>, %arg7: memref<128x1xf32, #tpu.memory_space<vmem>>, %arg8: memref<36x512xf32, #tpu.memory_space<vmem>>, %arg9: memref<72x128xf32, #tpu.memory_space<vmem>>, %arg10: memref<512x128xf32, #tpu.memory_space<vmem>>, %arg11: memref<128x32xf32, #tpu.memory_space<vmem>>, %arg12: memref<256x16xf32, #tpu.memory_space<vmem>>, %arg13: memref<256x32xf32, #tpu.memory_space<vmem>>, %arg14: memref<32x2xf32, #tpu.memory_space<vmem>>, %arg15: memref<1x16x128xf32, #tpu.memory_space<vmem>>, %arg16: memref<1x128x2xf32, #tpu.memory_space<vmem>>) attributes {dimension_semantics = [#tpu.dimension_semantics<parallel>], iteration_bounds = array<i64: 1>, scalar_prefetch = 0 : i64, scratch_operands = 0 : i64, tpu.core_type = #tpu.core_type<tc>, window_params = [{transform_indices = @transform_0, window_bounds = array<i64: 1, 4, 512>}, {pipeline_mode = #tpu.pipeline_mode<synchronous>, transform_indices = @transform_1, window_bounds = array<i64: 8, 36>}, {pipeline_mode = #tpu.pipeline_mode<synchronous>, transform_indices = @transform_2, window_bounds = array<i64: 8, 1>}, {pipeline_mode = #tpu.pipeline_mode<synchronous>, transform_indices = @transform_3, window_bounds = array<i64: 16, 72>}, {pipeline_mode = #tpu.pipeline_mode<synchronous>, transform_indices = @transform_4, window_bounds = array<i64: 16, 1>}, {pipeline_mode = #tpu.pipeline_mode<synchronous>, transform_indices = @transform_5, window_bounds = array<i64: 128, 256>}, {pipeline_mode = #tpu.pipeline_mode<synchronous>, transform_indices = @transform_6, window_bounds = array<i64: 128, 1>}, {pipeline_mode = #tpu.pipeline_mode<synchronous>, transform_indices = @transform_7, window_bounds = array<i64: 36, 512>}, {pipeline_mode = #tpu.pipeline_mode<synchronous>, transform_indices = @transform_8, window_bounds = array<i64: 72, 128>}, {pipeline_mode = #tpu.pipeline_mode<synchronous>, transform_indices = @transform_9, window_bounds = array<i64: 512, 128>}, {pipeline_mode = #tpu.pipeline_mode<synchronous>, transform_indices = @transform_10, window_bounds = array<i64: 128, 32>}, {pipeline_mode = #tpu.pipeline_mode<synchronous>, transform_indices = @transform_11, window_bounds = array<i64: 256, 16>}, {pipeline_mode = #tpu.pipeline_mode<synchronous>, transform_indices = @transform_12, window_bounds = array<i64: 256, 32>}, {pipeline_mode = #tpu.pipeline_mode<synchronous>, transform_indices = @transform_13, window_bounds = array<i64: 32, 2>}, {transform_indices = @transform_14, window_bounds = array<i64: 1, 16, 128>}, {transform_indices = @transform_15, window_bounds = array<i64: 1, 128, 2>}]} {
    %c0 = arith.constant 0 : index
    %c0_0 = arith.constant 0 : index
    %c0_1 = arith.constant 0 : index
    %0 = vector.load %arg1[%c0, %c0_0, %c0_1] : memref<1x4x512xf32, #tpu.memory_space<vmem>>, vector<1x4x512xf32>
    %1 = vector.shape_cast %0 : vector<1x4x512xf32> to vector<4x512xf32>
    %c0_2 = arith.constant 0 : index
    %c0_3 = arith.constant 0 : index
    %2 = vector.load %arg2[%c0_2, %c0_3] : memref<8x36xf32, #tpu.memory_space<vmem>>, vector<8x36xf32>
    %c0_4 = arith.constant 0 : index
    %c0_5 = arith.constant 0 : index
    %3 = vector.load %arg3[%c0_4, %c0_5] : memref<8x1xf32, #tpu.memory_space<vmem>>, vector<8x1xf32>
    %c0_6 = arith.constant 0 : index
    %c0_7 = arith.constant 0 : index
    %4 = vector.load %arg8[%c0_6, %c0_7] : memref<36x512xf32, #tpu.memory_space<vmem>>, vector<36x512xf32>
    %5 = vector.extract_strided_slice %1 {offsets = [0, 495], sizes = [4, 17], strides = [1, 1]} : vector<4x512xf32> to vector<4x17xf32>
    %6 = vector.extract_strided_slice %1 {offsets = [0, 0], sizes = [4, 495], strides = [1, 1]} : vector<4x512xf32> to vector<4x495xf32>
    %7 = tpu.concatenate %5, %6 in 1 : vector<4x17xf32>, vector<4x495xf32> -> vector<4x512xf32>
    %8 = vector.extract_strided_slice %1 {offsets = [0, 496], sizes = [4, 16], strides = [1, 1]} : vector<4x512xf32> to vector<4x16xf32>
    %9 = vector.extract_strided_slice %1 {offsets = [0, 0], sizes = [4, 496], strides = [1, 1]} : vector<4x512xf32> to vector<4x496xf32>
    %10 = tpu.concatenate %8, %9 in 1 : vector<4x16xf32>, vector<4x496xf32> -> vector<4x512xf32>
    %11 = vector.extract_strided_slice %1 {offsets = [0, 497], sizes = [4, 15], strides = [1, 1]} : vector<4x512xf32> to vector<4x15xf32>
    %12 = vector.extract_strided_slice %1 {offsets = [0, 0], sizes = [4, 497], strides = [1, 1]} : vector<4x512xf32> to vector<4x497xf32>
    %13 = tpu.concatenate %11, %12 in 1 : vector<4x15xf32>, vector<4x497xf32> -> vector<4x512xf32>
    %14 = vector.extract_strided_slice %1 {offsets = [0, 511], sizes = [4, 1], strides = [1, 1]} : vector<4x512xf32> to vector<4x1xf32>
    %15 = vector.extract_strided_slice %1 {offsets = [0, 0], sizes = [4, 511], strides = [1, 1]} : vector<4x512xf32> to vector<4x511xf32>
    %16 = tpu.concatenate %14, %15 in 1 : vector<4x1xf32>, vector<4x511xf32> -> vector<4x512xf32>
    %17 = vector.extract_strided_slice %1 {offsets = [0, 1], sizes = [4, 511], strides = [1, 1]} : vector<4x512xf32> to vector<4x511xf32>
    %18 = vector.extract_strided_slice %1 {offsets = [0, 0], sizes = [4, 1], strides = [1, 1]} : vector<4x512xf32> to vector<4x1xf32>
    %19 = tpu.concatenate %17, %18 in 1 : vector<4x511xf32>, vector<4x1xf32> -> vector<4x512xf32>
    %20 = vector.extract_strided_slice %1 {offsets = [0, 15], sizes = [4, 497], strides = [1, 1]} : vector<4x512xf32> to vector<4x497xf32>
    %21 = vector.extract_strided_slice %1 {offsets = [0, 0], sizes = [4, 15], strides = [1, 1]} : vector<4x512xf32> to vector<4x15xf32>
    %22 = tpu.concatenate %20, %21 in 1 : vector<4x497xf32>, vector<4x15xf32> -> vector<4x512xf32>
    %23 = vector.extract_strided_slice %1 {offsets = [0, 16], sizes = [4, 496], strides = [1, 1]} : vector<4x512xf32> to vector<4x496xf32>
    %24 = vector.extract_strided_slice %1 {offsets = [0, 0], sizes = [4, 16], strides = [1, 1]} : vector<4x512xf32> to vector<4x16xf32>
    %25 = tpu.concatenate %23, %24 in 1 : vector<4x496xf32>, vector<4x16xf32> -> vector<4x512xf32>
    %26 = vector.extract_strided_slice %1 {offsets = [0, 17], sizes = [4, 495], strides = [1, 1]} : vector<4x512xf32> to vector<4x495xf32>
    %27 = vector.extract_strided_slice %1 {offsets = [0, 0], sizes = [4, 17], strides = [1, 1]} : vector<4x512xf32> to vector<4x17xf32>
    %28 = tpu.concatenate %26, %27 in 1 : vector<4x495xf32>, vector<4x17xf32> -> vector<4x512xf32>
    %29 = tpu.concatenate %7, %10, %13, %16, %1, %19, %22, %25, %28 in 0 : vector<4x512xf32>, vector<4x512xf32>, vector<4x512xf32>, vector<4x512xf32>, vector<4x512xf32>, vector<4x512xf32>, vector<4x512xf32>, vector<4x512xf32>, vector<4x512xf32> -> vector<36x512xf32>
    %30 = arith.mulf %29, %4 : vector<36x512xf32>
    %cst = arith.constant dense<0.000000e+00> : vector<8x512xf32>
    %31 = tpu.matmul %2, %30, %cst {dimension_numbers = #tpu.dot_dimension_numbers<[1], [0], [0], [1], [0, 0, 1, 1], [], []>} : vector<8x36xf32>, vector<36x512xf32>, vector<8x512xf32> -> vector<8x512xf32>
    %32 = vector.broadcast %3 : vector<8x1xf32> to vector<8x512xf32>
    %33 = arith.addf %31, %32 : vector<8x512xf32>
    %cst_8 = arith.constant 0.000000e+00 : f32
    %34 = vector.broadcast %cst_8 : f32 to vector<8x512xf32>
    %35 = arith.maximumf %33, %34 : vector<8x512xf32>
    %36 = vector.extract_strided_slice %35 {offsets = [0, 1], sizes = [8, 511], strides = [1, 1]} : vector<8x512xf32> to vector<8x511xf32>
    %37 = vector.extract_strided_slice %35 {offsets = [0, 0], sizes = [8, 1], strides = [1, 1]} : vector<8x512xf32> to vector<8x1xf32>
    %38 = tpu.concatenate %36, %37 in 1 : vector<8x511xf32>, vector<8x1xf32> -> vector<8x512xf32>
    %39 = arith.maximumf %35, %38 : vector<8x512xf32>
    %40 = vector.extract_strided_slice %39 {offsets = [0, 16], sizes = [8, 496], strides = [1, 1]} : vector<8x512xf32> to vector<8x496xf32>
    %41 = vector.extract_strided_slice %39 {offsets = [0, 0], sizes = [8, 16], strides = [1, 1]} : vector<8x512xf32> to vector<8x16xf32>
    %42 = tpu.concatenate %40, %41 in 1 : vector<8x496xf32>, vector<8x16xf32> -> vector<8x512xf32>
    %43 = arith.maximumf %39, %42 : vector<8x512xf32>
    %c0_9 = arith.constant 0 : index
    %c0_10 = arith.constant 0 : index
    %44 = vector.load %arg10[%c0_9, %c0_10] : memref<512x128xf32, #tpu.memory_space<vmem>>, vector<512x128xf32>
    %cst_11 = arith.constant dense<0.000000e+00> : vector<8x128xf32>
    %45 = tpu.matmul %43, %44, %cst_11 {dimension_numbers = #tpu.dot_dimension_numbers<[1], [0], [0], [1], [0, 0, 1, 1], [], []>} : vector<8x512xf32>, vector<512x128xf32>, vector<8x128xf32> -> vector<8x128xf32>
    %c0_12 = arith.constant 0 : index
    %c0_13 = arith.constant 0 : index
    %46 = vector.load %arg4[%c0_12, %c0_13] : memref<16x72xf32, #tpu.memory_space<vmem>>, vector<16x72xf32>
    %c0_14 = arith.constant 0 : index
    %c0_15 = arith.constant 0 : index
    %47 = vector.load %arg5[%c0_14, %c0_15] : memref<16x1xf32, #tpu.memory_space<vmem>>, vector<16x1xf32>
    %c0_16 = arith.constant 0 : index
    %c0_17 = arith.constant 0 : index
    %48 = vector.load %arg9[%c0_16, %c0_17] : memref<72x128xf32, #tpu.memory_space<vmem>>, vector<72x128xf32>
    %49 = vector.extract_strided_slice %45 {offsets = [0, 119], sizes = [8, 9], strides = [1, 1]} : vector<8x128xf32> to vector<8x9xf32>
    %50 = vector.extract_strided_slice %45 {offsets = [0, 0], sizes = [8, 119], strides = [1, 1]} : vector<8x128xf32> to vector<8x119xf32>
    %51 = tpu.concatenate %49, %50 in 1 : vector<8x9xf32>, vector<8x119xf32> -> vector<8x128xf32>
    %52 = vector.extract_strided_slice %45 {offsets = [0, 120], sizes = [8, 8], strides = [1, 1]} : vector<8x128xf32> to vector<8x8xf32>
    %53 = vector.extract_strided_slice %45 {offsets = [0, 0], sizes = [8, 120], strides = [1, 1]} : vector<8x128xf32> to vector<8x120xf32>
    %54 = tpu.concatenate %52, %53 in 1 : vector<8x8xf32>, vector<8x120xf32> -> vector<8x128xf32>
    %55 = vector.extract_strided_slice %45 {offsets = [0, 121], sizes = [8, 7], strides = [1, 1]} : vector<8x128xf32> to vector<8x7xf32>
    %56 = vector.extract_strided_slice %45 {offsets = [0, 0], sizes = [8, 121], strides = [1, 1]} : vector<8x128xf32> to vector<8x121xf32>
    %57 = tpu.concatenate %55, %56 in 1 : vector<8x7xf32>, vector<8x121xf32> -> vector<8x128xf32>
    %58 = vector.extract_strided_slice %45 {offsets = [0, 127], sizes = [8, 1], strides = [1, 1]} : vector<8x128xf32> to vector<8x1xf32>
    %59 = vector.extract_strided_slice %45 {offsets = [0, 0], sizes = [8, 127], strides = [1, 1]} : vector<8x128xf32> to vector<8x127xf32>
    %60 = tpu.concatenate %58, %59 in 1 : vector<8x1xf32>, vector<8x127xf32> -> vector<8x128xf32>
    %61 = vector.extract_strided_slice %45 {offsets = [0, 1], sizes = [8, 127], strides = [1, 1]} : vector<8x128xf32> to vector<8x127xf32>
    %62 = vector.extract_strided_slice %45 {offsets = [0, 0], sizes = [8, 1], strides = [1, 1]} : vector<8x128xf32> to vector<8x1xf32>
    %63 = tpu.concatenate %61, %62 in 1 : vector<8x127xf32>, vector<8x1xf32> -> vector<8x128xf32>
    %64 = vector.extract_strided_slice %45 {offsets = [0, 7], sizes = [8, 121], strides = [1, 1]} : vector<8x128xf32> to vector<8x121xf32>
    %65 = vector.extract_strided_slice %45 {offsets = [0, 0], sizes = [8, 7], strides = [1, 1]} : vector<8x128xf32> to vector<8x7xf32>
    %66 = tpu.concatenate %64, %65 in 1 : vector<8x121xf32>, vector<8x7xf32> -> vector<8x128xf32>
    %67 = vector.extract_strided_slice %45 {offsets = [0, 8], sizes = [8, 120], strides = [1, 1]} : vector<8x128xf32> to vector<8x120xf32>
    %68 = vector.extract_strided_slice %45 {offsets = [0, 0], sizes = [8, 8], strides = [1, 1]} : vector<8x128xf32> to vector<8x8xf32>
    %69 = tpu.concatenate %67, %68 in 1 : vector<8x120xf32>, vector<8x8xf32> -> vector<8x128xf32>
    %70 = vector.extract_strided_slice %45 {offsets = [0, 9], sizes = [8, 119], strides = [1, 1]} : vector<8x128xf32> to vector<8x119xf32>
    %71 = vector.extract_strided_slice %45 {offsets = [0, 0], sizes = [8, 9], strides = [1, 1]} : vector<8x128xf32> to vector<8x9xf32>
    %72 = tpu.concatenate %70, %71 in 1 : vector<8x119xf32>, vector<8x9xf32> -> vector<8x128xf32>
    %73 = tpu.concatenate %51, %54, %57, %60, %45, %63, %66, %69, %72 in 0 : vector<8x128xf32>, vector<8x128xf32>, vector<8x128xf32>, vector<8x128xf32>, vector<8x128xf32>, vector<8x128xf32>, vector<8x128xf32>, vector<8x128xf32>, vector<8x128xf32> -> vector<72x128xf32>
    %74 = arith.mulf %73, %48 : vector<72x128xf32>
    %cst_18 = arith.constant dense<0.000000e+00> : vector<16x128xf32>
    %75 = tpu.matmul %46, %74, %cst_18 {dimension_numbers = #tpu.dot_dimension_numbers<[1], [0], [0], [1], [0, 0, 1, 1], [], []>} : vector<16x72xf32>, vector<72x128xf32>, vector<16x128xf32> -> vector<16x128xf32>
    %76 = vector.broadcast %47 : vector<16x1xf32> to vector<16x128xf32>
    %77 = arith.addf %75, %76 : vector<16x128xf32>
    %cst_19 = arith.constant 0.000000e+00 : f32
    %78 = vector.broadcast %cst_19 : f32 to vector<16x128xf32>
    %79 = arith.maximumf %77, %78 : vector<16x128xf32>
    %c0_20 = arith.constant 0 : index
    %c0_21 = arith.constant 0 : index
    %c0_22 = arith.constant 0 : index
    %80 = vector.load %arg15[%c0_20, %c0_21, %c0_22] : memref<1x16x128xf32, #tpu.memory_space<vmem>>, vector<1x16x128xf32>
    %81 = vector.shape_cast %80 : vector<1x16x128xf32> to vector<16x128xf32>
    %82 = vector.shape_cast %79 : vector<16x128xf32> to vector<1x16x128xf32>
    tpu.vector_store %arg15[%c0_20, %c0_21, %c0_22], %82 {strides = array<i32>} : memref<1x16x128xf32, #tpu.memory_space<vmem>>, vector<1x16x128xf32>,
    %83 = vector.extract_strided_slice %79 {offsets = [0, 1], sizes = [16, 127], strides = [1, 1]} : vector<16x128xf32> to vector<16x127xf32>
    %84 = vector.extract_strided_slice %79 {offsets = [0, 0], sizes = [16, 1], strides = [1, 1]} : vector<16x128xf32> to vector<16x1xf32>
    %85 = tpu.concatenate %83, %84 in 1 : vector<16x127xf32>, vector<16x1xf32> -> vector<16x128xf32>
    %86 = arith.maximumf %79, %85 : vector<16x128xf32>
    %87 = vector.extract_strided_slice %86 {offsets = [0, 8], sizes = [16, 120], strides = [1, 1]} : vector<16x128xf32> to vector<16x120xf32>
    %88 = vector.extract_strided_slice %86 {offsets = [0, 0], sizes = [16, 8], strides = [1, 1]} : vector<16x128xf32> to vector<16x8xf32>
    %89 = tpu.concatenate %87, %88 in 1 : vector<16x120xf32>, vector<16x8xf32> -> vector<16x128xf32>
    %90 = arith.maximumf %86, %89 : vector<16x128xf32>
    %c0_23 = arith.constant 0 : index
    %c0_24 = arith.constant 0 : index
    %91 = vector.load %arg11[%c0_23, %c0_24] : memref<128x32xf32, #tpu.memory_space<vmem>>, vector<128x32xf32>
    %cst_25 = arith.constant dense<0.000000e+00> : vector<16x32xf32>
    %92 = tpu.matmul %90, %91, %cst_25 {dimension_numbers = #tpu.dot_dimension_numbers<[1], [0], [0], [1], [0, 0, 1, 1], [], []>} : vector<16x128xf32>, vector<128x32xf32>, vector<16x32xf32> -> vector<16x32xf32>
    %c0_26 = arith.constant 0 : index
    %c0_27 = arith.constant 0 : index
    %93 = vector.load %arg12[%c0_26, %c0_27] : memref<256x16xf32, #tpu.memory_space<vmem>>, vector<256x16xf32>
    %cst_28 = arith.constant dense<0.000000e+00> : vector<256x32xf32>
    %94 = tpu.matmul %93, %92, %cst_28 {dimension_numbers = #tpu.dot_dimension_numbers<[1], [0], [0], [1], [0, 0, 1, 1], [], []>} : vector<256x16xf32>, vector<16x32xf32>, vector<256x32xf32> -> vector<256x32xf32>
    %c0_29 = arith.constant 0 : index
    %c0_30 = arith.constant 0 : index
    %95 = vector.load %arg13[%c0_29, %c0_30] : memref<256x32xf32, #tpu.memory_space<vmem>>, vector<256x32xf32>
    %96 = arith.mulf %94, %95 : vector<256x32xf32>
    %c0_31 = arith.constant 0 : index
    %c0_32 = arith.constant 0 : index
    %97 = vector.load %arg14[%c0_31, %c0_32] : memref<32x2xf32, #tpu.memory_space<vmem>>, vector<32x2xf32>
    %cst_33 = arith.constant dense<0.000000e+00> : vector<256x2xf32>
    %98 = tpu.matmul %96, %97, %cst_33 {dimension_numbers = #tpu.dot_dimension_numbers<[1], [0], [0], [1], [0, 0, 1, 1], [], []>} : vector<256x32xf32>, vector<32x2xf32>, vector<256x2xf32> -> vector<256x2xf32>
    %c0_34 = arith.constant 0 : index
    %c0_35 = arith.constant 0 : index
    %99 = vector.load %arg6[%c0_34, %c0_35] : memref<128x256xf32, #tpu.memory_space<vmem>>, vector<128x256xf32>
    %cst_36 = arith.constant dense<0.000000e+00> : vector<128x2xf32>
    %100 = tpu.matmul %99, %98, %cst_36 {dimension_numbers = #tpu.dot_dimension_numbers<[1], [0], [0], [1], [0, 0, 1, 1], [], []>} : vector<128x256xf32>, vector<256x2xf32>, vector<128x2xf32> -> vector<128x2xf32>
    %c0_37 = arith.constant 0 : index
    %c0_38 = arith.constant 0 : index
    %101 = vector.load %arg7[%c0_37, %c0_38] : memref<128x1xf32, #tpu.memory_space<vmem>>, vector<128x1xf32>
    %102 = vector.broadcast %101 : vector<128x1xf32> to vector<128x2xf32>
    %103 = arith.addf %100, %102 : vector<128x2xf32>
    %c0_39 = arith.constant 0 : index
    %c0_40 = arith.constant 0 : index
    %c0_41 = arith.constant 0 : index
    %104 = vector.load %arg16[%c0_39, %c0_40, %c0_41] : memref<1x128x2xf32, #tpu.memory_space<vmem>>, vector<1x128x2xf32>
    %105 = vector.shape_cast %104 : vector<1x128x2xf32> to vector<128x2xf32>
    %106 = vector.shape_cast %103 : vector<128x2xf32> to vector<1x128x2xf32>
    tpu.vector_store %arg16[%c0_39, %c0_40, %c0_41], %106 {strides = array<i32>} : memref<1x128x2xf32, #tpu.memory_space<vmem>>, vector<1x128x2xf32>,
    return
  }
  func.func @transform_0(%arg0: i32) -> (i32, i32, i32) {
    %c0_i32 = arith.constant 0 : i32
    %c0_i32_0 = arith.constant 0 : i32
    %c0_i32_1 = arith.constant 0 : i32
    return %arg0, %c0_i32, %c0_i32_0 : i32, i32, i32
  }
  func.func @transform_1(%arg0: i32) -> (i32, i32) {
    %c0_i32 = arith.constant 0 : i32
    %c0_i32_0 = arith.constant 0 : i32
    %c0_i32_1 = arith.constant 0 : i32
    return %c0_i32, %c0_i32_0 : i32, i32
  }
  func.func @transform_2(%arg0: i32) -> (i32, i32) {
    %c0_i32 = arith.constant 0 : i32
    %c0_i32_0 = arith.constant 0 : i32
    %c0_i32_1 = arith.constant 0 : i32
    return %c0_i32, %c0_i32_0 : i32, i32
  }
  func.func @transform_3(%arg0: i32) -> (i32, i32) {
    %c0_i32 = arith.constant 0 : i32
    %c0_i32_0 = arith.constant 0 : i32
    %c0_i32_1 = arith.constant 0 : i32
    return %c0_i32, %c0_i32_0 : i32, i32
  }
  func.func @transform_4(%arg0: i32) -> (i32, i32) {
    %c0_i32 = arith.constant 0 : i32
    %c0_i32_0 = arith.constant 0 : i32
    %c0_i32_1 = arith.constant 0 : i32
    return %c0_i32, %c0_i32_0 : i32, i32
  }
  func.func @transform_5(%arg0: i32) -> (i32, i32) {
    %c0_i32 = arith.constant 0 : i32
    %c0_i32_0 = arith.constant 0 : i32
    %c0_i32_1 = arith.constant 0 : i32
    return %c0_i32, %c0_i32_0 : i32, i32
  }
  func.func @transform_6(%arg0: i32) -> (i32, i32) {
    %c0_i32 = arith.constant 0 : i32
    %c0_i32_0 = arith.constant 0 : i32
    %c0_i32_1 = arith.constant 0 : i32
    return %c0_i32, %c0_i32_0 : i32, i32
  }
  func.func @transform_7(%arg0: i32) -> (i32, i32) {
    %c0_i32 = arith.constant 0 : i32
    %c0_i32_0 = arith.constant 0 : i32
    %c0_i32_1 = arith.constant 0 : i32
    return %c0_i32, %c0_i32_0 : i32, i32
  }
  func.func @transform_8(%arg0: i32) -> (i32, i32) {
    %c0_i32 = arith.constant 0 : i32
    %c0_i32_0 = arith.constant 0 : i32
    %c0_i32_1 = arith.constant 0 : i32
    return %c0_i32, %c0_i32_0 : i32, i32
  }
  func.func @transform_9(%arg0: i32) -> (i32, i32) {
    %c0_i32 = arith.constant 0 : i32
    %c0_i32_0 = arith.constant 0 : i32
    %c0_i32_1 = arith.constant 0 : i32
    return %c0_i32, %c0_i32_0 : i32, i32
  }
  func.func @transform_10(%arg0: i32) -> (i32, i32) {
    %c0_i32 = arith.constant 0 : i32
    %c0_i32_0 = arith.constant 0 : i32
    %c0_i32_1 = arith.constant 0 : i32
    return %c0_i32, %c0_i32_0 : i32, i32
  }
  func.func @transform_11(%arg0: i32) -> (i32, i32) {
    %c0_i32 = arith.constant 0 : i32
    %c0_i32_0 = arith.constant 0 : i32
    %c0_i32_1 = arith.constant 0 : i32
    return %c0_i32, %c0_i32_0 : i32, i32
  }
  func.func @transform_12(%arg0: i32) -> (i32, i32) {
    %c0_i32 = arith.constant 0 : i32
    %c0_i32_0 = arith.constant 0 : i32
    %c0_i32_1 = arith.constant 0 : i32
    return %c0_i32, %c0_i32_0 : i32, i32
  }
  func.func @transform_13(%arg0: i32) -> (i32, i32) {
    %c0_i32 = arith.constant 0 : i32
    %c0_i32_0 = arith.constant 0 : i32
    %c0_i32_1 = arith.constant 0 : i32
    return %c0_i32, %c0_i32_0 : i32, i32
  }
  func.func @transform_14(%arg0: i32) -> (i32, i32, i32) {
    %c0_i32 = arith.constant 0 : i32
    %c0_i32_0 = arith.constant 0 : i32
    %c0_i32_1 = arith.constant 0 : i32
    return %arg0, %c0_i32, %c0_i32_0 : i32, i32, i32
  }
  func.func @transform_15(%arg0: i32) -> (i32, i32, i32) {
    %c0_i32 = arith.constant 0 : i32
    %c0_i32_0 = arith.constant 0 : i32
    %c0_i32_1 = arith.constant 0 : i32
    return %arg0, %c0_i32, %c0_i32_0 : i32, i32, i32
  }
}

</mosaic_0001>

<llo_original>
// kernel: forward.1
$region0: #{forward.1}
  #allocation0 [shape = 'u32[]', space=smem, size = 0x4, offset = 0x4, fixed_abs, tag = 'smem constant byte address 0x4 - core index']
  #allocation1 [shape = 'u32[144,128]{1,0:T(1,128)}', space=vmem, size = 0x12000, scoped, tag = 'internal scratch']
  %s0 = inlined_call_operand.vmem [shape: f32[1,4,512], index: 0, kind: input, shape index: {}]
  %s1 = inlined_call_operand.vmem [shape: f32[8,36], index: 1, kind: input, shape index: {}]
  %s2 = inlined_call_operand.vmem [shape: f32[8,1], index: 2, kind: input, shape index: {}]
  %s3 = inlined_call_operand.vmem [shape: f32[16,72], index: 3, kind: input, shape index: {}]
  %s4 = inlined_call_operand.vmem [shape: f32[16,1], index: 4, kind: input, shape index: {}]
  %s5 = inlined_call_operand.vmem [shape: f32[128,256], index: 5, kind: input, shape index: {}]
  %s6 = inlined_call_operand.vmem [shape: f32[128,1], index: 6, kind: input, shape index: {}]
  %s7 = inlined_call_operand.vmem [shape: f32[36,512], index: 7, kind: input, shape index: {}]
  %s8 = inlined_call_operand.vmem [shape: f32[72,128], index: 8, kind: input, shape index: {}]
  %s9 = inlined_call_operand.vmem [shape: f32[512,128], index: 9, kind: input, shape index: {}]
  %s10 = inlined_call_operand.vmem [shape: f32[128,32], index: 10, kind: input, shape index: {}]
  %s11 = inlined_call_operand.vmem [shape: f32[256,16], index: 11, kind: input, shape index: {}]
  %s12 = inlined_call_operand.vmem [shape: f32[256,32], index: 12, kind: input, shape index: {}]
  %s13 = inlined_call_operand.vmem [shape: f32[32,2], index: 13, kind: input, shape index: {}]
  %s14 = inlined_call_operand.vmem [shape: f32[1,16,128], index: 14, kind: output, shape index: {0}]
  %s15 = inlined_call_operand.vmem [shape: f32[1,128,2], index: 15, kind: output, shape index: {1}]
  %16 = xla_tuple %s14, %s15
  %s17 = sld [smem:[#allocation0]]
  $region74: #{forward.1} parent=0
    _
  %s19 = ssub.s32 1, %s17
  %s20 = scalar_select 0, %s19, %s17
  // Predicated region
  $region2: #{forward.1} parent=0 // pred_check
    _
  $region3: #{forward.1} parent=0 // pred_check_branch
    %22 = sbr.rel (0) target = $region5
  $region4: #{forward.1} parent=0 // pred_region
    _
  $region5: #{forward.1} parent=0 // pred_fallthru
    _
  // Predicated region
  $region6: #{forward.1} parent=0 // pred_check
    _
  $region7: #{forward.1} parent=0 // pred_check_branch
    %24 = sbr.rel (0) target = $region9
  $region8: #{forward.1} parent=0 // pred_region
    _
  $region9: #{forward.1} parent=0 // pred_fallthru
    _
  // Predicated region
  $region10: #{forward.1} parent=0 // pred_check
    _
  $region11: #{forward.1} parent=0 // pred_check_branch
    %26 = sbr.rel (0) target = $region13
  $region12: #{forward.1} parent=0 // pred_region
    _
  $region13: #{forward.1} parent=0 // pred_fallthru
    _
  // Predicated region
  $region14: #{forward.1} parent=0 // pred_check
    _
  $region15: #{forward.1} parent=0 // pred_check_branch
    %28 = sbr.rel (0) target = $region17
  $region16: #{forward.1} parent=0 // pred_region
    _
  $region17: #{forward.1} parent=0 // pred_fallthru
    _
  // Predicated region
  $region18: #{forward.1} parent=0 // pred_check
    _
  $region19: #{forward.1} parent=0 // pred_check_branch
    %30 = sbr.rel (0) target = $region21
  $region20: #{forward.1} parent=0 // pred_region
    _
  $region21: #{forward.1} parent=0 // pred_fallthru
    _
  // Predicated region
  $region22: #{forward.1} parent=0 // pred_check
    _
  $region23: #{forward.1} parent=0 // pred_check_branch
    %32 = sbr.rel (0) target = $region25
  $region24: #{forward.1} parent=0 // pred_region
    _
  $region25: #{forward.1} parent=0 // pred_fallthru
    _
  // Predicated region
  $region26: #{forward.1} parent=0 // pred_check
    _
  $region27: #{forward.1} parent=0 // pred_check_branch
    %34 = sbr.rel (0) target = $region29
  $region28: #{forward.1} parent=0 // pred_region
    _
  $region29: #{forward.1} parent=0 // pred_fallthru
    _
  // Predicated region
  $region30: #{forward.1} parent=0 // pred_check
    _
  $region31: #{forward.1} parent=0 // pred_check_branch
    %36 = sbr.rel (0) target = $region33
  $region32: #{forward.1} parent=0 // pred_region
    _
  $region33: #{forward.1} parent=0 // pred_fallthru
    _
  // Predicated region
  $region34: #{forward.1} parent=0 // pred_check
    _
  $region35: #{forward.1} parent=0 // pred_check_branch
    %38 = sbr.rel (0) target = $region37
  $region36: #{forward.1} parent=0 // pred_region
    _
  $region37: #{forward.1} parent=0 // pred_fallthru
    _
  // Predicated region
  $region38: #{forward.1} parent=0 // pred_check
    _
  $region39: #{forward.1} parent=0 // pred_check_branch
    %40 = sbr.rel (0) target = $region41
  $region40: #{forward.1} parent=0 // pred_region
    _
  $region41: #{forward.1} parent=0 // pred_fallthru
    _
  // Predicated region
  $region42: #{forward.1} parent=0 // pred_check
    _
  $region43: #{forward.1} parent=0 // pred_check_branch
    %42 = sbr.rel (0) target = $region45
  $region44: #{forward.1} parent=0 // pred_region
    _
  $region45: #{forward.1} parent=0 // pred_fallthru
    _
  // Predicated region
  $region46: #{forward.1} parent=0 // pred_check
    _
  $region47: #{forward.1} parent=0 // pred_check_branch
    %44 = sbr.rel (0) target = $region49
  $region48: #{forward.1} parent=0 // pred_region
    _
  $region49: #{forward.1} parent=0 // pred_fallthru
    _
  // Predicated region
  $region50: #{forward.1} parent=0 // pred_check
    _
  $region51: #{forward.1} parent=0 // pred_check_branch
    %46 = sbr.rel (0) target = $region53
  $region52: #{forward.1} parent=0 // pred_region
    _
  $region53: #{forward.1} parent=0 // pred_fallthru
    _
  // Predicated region
  $region54: #{forward.1} parent=0 // pred_check
    _
  $region55: #{forward.1} parent=0 // pred_check_branch
    %48 = sbr.rel (0) target = $region57
  $region56: #{forward.1} parent=0 // pred_region
    _
  $region57: #{forward.1} parent=0 // pred_fallthru
    _
  %v49 = vld [vmem:[%s0] sm:$0xff]
  %v50 = vld [vmem:[%s0 + $0x8] sm:$0xff]
  %v51 = vld [vmem:[%s1] sm:$0xff]
  %v52 = vld [vmem:[%s2] sm:$0xff]
  %v53 = vld [vmem:[%s7] sm:$0xff]
  %v54 = vld [vmem:[%s7 + $0x8] sm:$0xff]
  %v55 = vld [vmem:[%s7 + $0x10] sm:$0xff]
  %v56 = vld [vmem:[%s7 + $0x18] sm:$0xff]
  %v57 = vld [vmem:[%s7 + $0x20] sm:$0xff]
  %v58 = vld [vmem:[%s7 + $0x28] sm:$0xff]
  %v59 = vld [vmem:[%s7 + $0x30] sm:$0xff]
  %v60 = vld [vmem:[%s7 + $0x38] sm:$0xff]
  %v61 = vld [vmem:[%s7 + $0x40] sm:$0xff]
  %v62 = vld [vmem:[%s7 + $0x48] sm:$0xff]
  %v63 = vld [vmem:[%s7 + $0x50] sm:$0xff]
  %v64 = vld [vmem:[%s7 + $0x58] sm:$0xff]
  %v65 = vld [vmem:[%s7 + $0x60] sm:$0xff]
  %v66 = vld [vmem:[%s7 + $0x68] sm:$0xff]
  %v67 = vld [vmem:[%s7 + $0x70] sm:$0xff]
  %v68 = vld [vmem:[%s7 + $0x78] sm:$0xff]
  %v69 = vld [vmem:[%s7 + $0x80] sm:$0xf]
  %v70 = vld [vmem:[%s7 + $0x88] sm:$0xf]
  %v71 = vld [vmem:[%s7 + $0x90] sm:$0xf]
  %v72 = vld [vmem:[%s7 + $0x98] sm:$0xf]
  %v74 = vcombine.high %v50, %v50
  %75 = vrot.lane.b32.xlu0 %v74, 17
  %v76 = vpop.permute.xlu0 %75
  %v79 = vcombine.high %v49, %v49
  %80 = vrot.lane.b32.xlu0 %v49, 17
  %v81 = vpop.permute.xlu0 %80
  %82 = vrot.lane.b32.xlu0 %v79, 17
  %v83 = vpop.permute.xlu0 %82
  %84 = vrot.lane.b32.xlu0 %v50, 17
  %v85 = vpop.permute.xlu0 %84
  %vm86 = vcmask 138240
  %v87 = vsel %vm86, %v81, %v83
  %v88 = vsel %vm86, %v83, %v85
  %v89 = vsel %vm86, %v85, %v76
  %v94 = vsel %vm86, %v76, %v81
  %95 = vrot.lane.b32.xlu0 %v74, 16
  %v96 = vpop.permute.xlu0 %95
  %98 = vrot.lane.b32.xlu0 %v49, 16
  %v99 = vpop.permute.xlu0 %98
  %100 = vrot.lane.b32.xlu0 %v79, 16
  %v101 = vpop.permute.xlu0 %100
  %102 = vrot.lane.b32.xlu0 %v50, 16
  %v103 = vpop.permute.xlu0 %102
  %vm104 = vcmask 130048
  %v105 = vsel %vm104, %v99, %v101
  %v106 = vsel %vm104, %v101, %v103
  %v107 = vsel %vm104, %v103, %v96
  %v109 = vsel %vm104, %v96, %v99
  %110 = vrot.lane.b32.xlu0 %v74, 15
  %v111 = vpop.permute.xlu0 %110
  %113 = vrot.lane.b32.xlu0 %v49, 15
  %v114 = vpop.permute.xlu0 %113
  %115 = vrot.lane.b32.xlu0 %v79, 15
  %v116 = vpop.permute.xlu0 %115
  %117 = vrot.lane.b32.xlu0 %v50, 15
  %v118 = vpop.permute.xlu0 %117
  %vm119 = vcmask 121856
  %v120 = vsel %vm119, %v114, %v116
  %v121 = vsel %vm119, %v116, %v118
  %v122 = vsel %vm119, %v118, %v111
  %v127 = vsel %vm119, %v111, %v114
  %128 = vrot.lane.b32.xlu0 %v74, 1
  %v129 = vpop.permute.xlu0 %128
  %131 = vrot.lane.b32.xlu0 %v49, 1
  %v132 = vpop.permute.xlu0 %131
  %133 = vrot.lane.b32.xlu0 %v79, 1
  %v134 = vpop.permute.xlu0 %133
  %135 = vrot.lane.b32.xlu0 %v50, 1
  %v136 = vpop.permute.xlu0 %135
  %vm137 = vcmask 7168
  %v138 = vsel %vm137, %v132, %v134
  %v139 = vsel %vm137, %v134, %v136
  %v140 = vsel %vm137, %v136, %v129
  %v142 = vsel %vm137, %v129, %v132
  %143 = vrot.lane.b32.xlu0 %v49, 127
  %v144 = vpop.permute.xlu0 %143
  %145 = vrot.lane.b32.xlu0 %v79, 127
  %v146 = vpop.permute.xlu0 %145
  %147 = vrot.lane.b32.xlu0 %v50, 127
  %v148 = vpop.permute.xlu0 %147
  %149 = vrot.lane.b32.xlu0 %v74, 127
  %v150 = vpop.permute.xlu0 %149
  %vm151 = vcmask 1039360
  %v152 = vsel %vm151, %v144, %v146
  %v153 = vsel %vm151, %v146, %v148
  %v154 = vsel %vm151, %v148, %v150
  %v157 = vsel %vm151, %v150, %v144
  %158 = vrot.lane.b32.xlu0 %v49, 113
  %v159 = vpop.permute.xlu0 %158
  %160 = vrot.lane.b32.xlu0 %v79, 113
  %v161 = vpop.permute.xlu0 %160
  %162 = vrot.lane.b32.xlu0 %v50, 113
  %v163 = vpop.permute.xlu0 %162
  %164 = vrot.lane.b32.xlu0 %v74, 113
  %v165 = vpop.permute.xlu0 %164
  %vm166 = vcmask 924672
  %v167 = vsel %vm166, %v159, %v161
  %v168 = vsel %vm166, %v161, %v163
  %v169 = vsel %vm166, %v163, %v165
  %v175 = vsel %vm166, %v165, %v159
  %176 = vrot.lane.b32.xlu0 %v49, 112
  %v177 = vpop.permute.xlu0 %176
  %178 = vrot.lane.b32.xlu0 %v79, 112
  %v179 = vpop.permute.xlu0 %178
  %180 = vrot.lane.b32.xlu0 %v50, 112
  %v181 = vpop.permute.xlu0 %180
  %182 = vrot.lane.b32.xlu0 %v74, 112
  %v183 = vpop.permute.xlu0 %182
  %vm184 = vcmask 916480
  %v185 = vsel %vm184, %v177, %v179
  %v186 = vsel %vm184, %v179, %v181
  %v187 = vsel %vm184, %v181, %v183
  %v190 = vsel %vm184, %v183, %v177
  %191 = vrot.lane.b32.xlu0 %v49, 111
  %v192 = vpop.permute.xlu0 %191
  %193 = vrot.lane.b32.xlu0 %v79, 111
  %v194 = vpop.permute.xlu0 %193
  %195 = vrot.lane.b32.xlu0 %v50, 111
  %v196 = vpop.permute.xlu0 %195
  %197 = vrot.lane.b32.xlu0 %v74, 111
  %v198 = vpop.permute.xlu0 %197
  %vm199 = vcmask 908288
  %v200 = vsel %vm199, %v192, %v194
  %v201 = vsel %vm199, %v194, %v196
  %v202 = vsel %vm199, %v196, %v198
  %v208 = vsel %vm199, %v198, %v192
  %v210 = vrot.slane %v109, 4
  %v211 = vrot.slane %v105, 4
  %v212 = vrot.slane %v106, 4
  %v213 = vrot.slane %v107, 4
  %v219 = vrot.slane %v142, 4
  %v220 = vrot.slane %v138, 4
  %v221 = vrot.slane %v139, 4
  %v222 = vrot.slane %v140, 4
  %v230 = vrot.slane %v152, 4
  %v231 = vrot.slane %v153, 4
  %v232 = vrot.slane %v154, 4
  %v233 = vrot.slane %v157, 4
  %v239 = vrot.slane %v185, 4
  %v240 = vrot.slane %v186, 4
  %v241 = vrot.slane %v187, 4
  %v242 = vrot.slane %v190, 4
  %vm247 = vcmask 1043456
  %v248 = vsel %vm247, %v94, %v210
  %v249 = vsel %vm247, %v87, %v211
  %v250 = vsel %vm247, %v88, %v212
  %v251 = vsel %vm247, %v89, %v213
  %v252 = vsel %vm247, %v127, %v219
  %v253 = vsel %vm247, %v120, %v220
  %v254 = vsel %vm247, %v121, %v221
  %v255 = vsel %vm247, %v122, %v222
  %v256 = vsel %vm247, %v49, %v230
  %v257 = vsel %vm247, %v79, %v231
  %v258 = vsel %vm247, %v50, %v232
  %v259 = vsel %vm247, %v74, %v233
  %v260 = vsel %vm247, %v167, %v239
  %v261 = vsel %vm247, %v168, %v240
  %v262 = vsel %vm247, %v169, %v241
  %v263 = vsel %vm247, %v175, %v242
  %v264 = vmul.f32 %v248, %v53
  %v265 = vmul.f32 %v249, %v54
  %v266 = vmul.f32 %v250, %v55
  %v267 = vmul.f32 %v251, %v56
  %v268 = vmul.f32 %v252, %v57
  %v269 = vmul.f32 %v253, %v58
  %v270 = vmul.f32 %v254, %v59
  %v271 = vmul.f32 %v255, %v60
  %v272 = vmul.f32 %v256, %v61
  %v273 = vmul.f32 %v257, %v62
  %v274 = vmul.f32 %v258, %v63
  %v275 = vmul.f32 %v259, %v64
  %v276 = vmul.f32 %v260, %v65
  %v277 = vmul.f32 %v261, %v66
  %v278 = vmul.f32 %v262, %v67
  %v279 = vmul.f32 %v263, %v68
  %v280 = vmul.f32 %v200, %v69
  %v281 = vmul.f32 %v201, %v70
  %v282 = vmul.f32 %v202, %v71
  %v283 = vmul.f32 %v208, %v72
  %285 = vset.pattern.permute.xlu0 0
  %286 = vperm.xlu0 %285, %v52
  %v287 = vpop.permute.xlu0 %286
  %vm289 = vcmask 293888
  %v291 = vsel %vm289, %v51, 0
  %v294 = vsel %vm247, %v280, 0
  %v297 = vsel %vm247, %v281, 0
  %v300 = vsel %vm247, %v282, 0
  %v303 = vsel %vm247, %v283, 0
  %305 = vmatprep.subr.mxu0 0.0
  %306 = vmatpush1.msra.mxu0 0.0
  %307 = vmatprep.subr.mxu0 0.0
  %308 = vmatpush1.msra.mxu0 0.0
  %309 = vmatprep.subr.mxu0 0.0
  %310 = vmatpush1.msra.mxu0 0.0
  %311 = vmatprep.subr.mxu0 0.0
  %312 = vmatpush1.msra.mxu0 0.0
  %313 = vmatprep.subr.mxu0 0.0
  %314 = vmatpush1.msra.mxu0 0.0
  %315 = vmatprep.subr.mxu0 0.0
  %316 = vmatpush1.msra.mxu0 0.0
  %317 = vmatprep.subr.mxu0 0.0
  %318 = vmatpush1.msra.mxu0 0.0
  %319 = vmatprep.subr.mxu0 0.0
  %320 = vmatpush1.msra.mxu0 0.0
  %321 = vmatprep.subr.mxu0 0.0
  %322 = vmatpush1.msra.mxu0 0.0
  %323 = vmatprep.subr.mxu0 0.0
  %324 = vmatpush1.msra.mxu0 0.0
  %325 = vmatprep.subr.mxu0 0.0
  %326 = vmatpush1.msra.mxu0 0.0
  %327 = vmatprep.subr.mxu0 %v297
  %328 = vmatpush1.msra.mxu0 %v294
  %329 = vmatprep.subr.mxu0 %v277
  %330 = vmatpush1.msra.mxu0 %v276
  %331 = vmatprep.subr.mxu0 %v273
  %332 = vmatpush1.msra.mxu0 %v272
  %333 = vmatprep.subr.mxu0 %v269
  %334 = vmatpush1.msra.mxu0 %v268
  %335 = vmatprep.subr.mxu0 %v265
  %336 = vmatpush1.msra.mxu0 %v264
  %337 = vmatprep.subr.mxu0 0.0
  %338 = vmatpush2.msra.mxu0 0.0
  %339 = vmatprep.subr.mxu0 0.0
  %340 = vmatpush2.msra.mxu0 0.0
  %341 = vmatprep.subr.mxu0 0.0
  %342 = vmatpush2.msra.mxu0 0.0
  %343 = vmatprep.subr.mxu0 0.0
  %344 = vmatpush2.msra.mxu0 0.0
  %345 = vmatprep.subr.mxu0 0.0
  %346 = vmatpush2.msra.mxu0 0.0
  %347 = vmatprep.subr.mxu0 0.0
  %348 = vmatpush2.msra.mxu0 0.0
  %349 = vmatprep.subr.mxu0 0.0
  %350 = vmatpush2.msra.mxu0 0.0
  %351 = vmatprep.subr.mxu0 0.0
  %352 = vmatpush2.msra.mxu0 0.0
  %353 = vmatprep.subr.mxu0 0.0
  %354 = vmatpush2.msra.mxu0 0.0
  %355 = vmatprep.subr.mxu0 0.0
  %356 = vmatpush2.msra.mxu0 0.0
  %357 = vmatprep.subr.mxu0 0.0
  %358 = vmatpush2.msra.mxu0 0.0
  %359 = vmatprep.subr.mxu0 0.0
  %360 = vmatpush2.msra.mxu0 0.0
  %361 = vmatprep.subr.mxu0 0.0
  %362 = vmatpush2.msra.mxu0 0.0
  %363 = vmatprep.subr.mxu0 0.0
  %364 = vmatpush2.msra.mxu0 0.0
  %365 = vmatprep.subr.mxu0 0.0
  %366 = vmatpush2.msra.mxu0 0.0
  %367 = vmatprep.subr.mxu0 0.0
  %368 = vmatpush2.msra.mxu0 0.0
  %369 = vmatprep.mubr.f32.mxu0 0.0
  %370 = vmatmul.mubr.f32.gmra.mxu0 %v291
  %v371 = vpop.f32.mrf.mxu0
  %v372 = vadd.f32 %v287, %v371
  %v373 = vpop.f32.mrf.mxu0
  %v374 = vadd.f32 %v287, %v373
  %375 = vdwg.mxu0
  %376 = vmatprep.subr.mxu0 0.0
  %377 = vmatpush1.msra.mxu0 0.0
  %378 = vmatprep.subr.mxu0 0.0
  %379 = vmatpush1.msra.mxu0 0.0
  %380 = vmatprep.subr.mxu0 0.0
  %381 = vmatpush1.msra.mxu0 0.0
  %382 = vmatprep.subr.mxu0 0.0
  %383 = vmatpush1.msra.mxu0 0.0
  %384 = vmatprep.subr.mxu0 0.0
  %385 = vmatpush1.msra.mxu0 0.0
  %386 = vmatprep.subr.mxu0 0.0
  %387 = vmatpush1.msra.mxu0 0.0
  %388 = vmatprep.subr.mxu0 0.0
  %389 = vmatpush1.msra.mxu0 0.0
  %390 = vmatprep.subr.mxu0 0.0
  %391 = vmatpush1.msra.mxu0 0.0
  %392 = vmatprep.subr.mxu0 0.0
  %393 = vmatpush1.msra.mxu0 0.0
  %394 = vmatprep.subr.mxu0 0.0
  %395 = vmatpush1.msra.mxu0 0.0
  %396 = vmatprep.subr.mxu0 0.0
  %397 = vmatpush1.msra.mxu0 0.0
  %398 = vmatprep.subr.mxu0 %v303
  %399 = vmatpush1.msra.mxu0 %v300
  %400 = vmatprep.subr.mxu0 %v279
  %401 = vmatpush1.msra.mxu0 %v278
  %402 = vmatprep.subr.mxu0 %v275
  %403 = vmatpush1.msra.mxu0 %v274
  %404 = vmatprep.subr.mxu0 %v271
  %405 = vmatpush1.msra.mxu0 %v270
  %406 = vmatprep.subr.mxu0 %v267
  %407 = vmatpush1.msra.mxu0 %v266
  %408 = vmatprep.subr.mxu0 0.0
  %409 = vmatpush2.msra.mxu0 0.0
  %410 = vmatprep.subr.mxu0 0.0
  %411 = vmatpush2.msra.mxu0 0.0
  %412 = vmatprep.subr.mxu0 0.0
  %413 = vmatpush2.msra.mxu0 0.0
  %414 = vmatprep.subr.mxu0 0.0
  %415 = vmatpush2.msra.mxu0 0.0
  %416 = vmatprep.subr.mxu0 0.0
  %417 = vmatpush2.msra.mxu0 0.0
  %418 = vmatprep.subr.mxu0 0.0
  %419 = vmatpush2.msra.mxu0 0.0
  %420 = vmatprep.subr.mxu0 0.0
  %421 = vmatpush2.msra.mxu0 0.0
  %422 = vmatprep.subr.mxu0 0.0
  %423 = vmatpush2.msra.mxu0 0.0
  %424 = vmatprep.subr.mxu0 0.0
  %425 = vmatpush2.msra.mxu0 0.0
  %426 = vmatprep.subr.mxu0 0.0
  %427 = vmatpush2.msra.mxu0 0.0
  %428 = vmatprep.subr.mxu0 0.0
  %429 = vmatpush2.msra.mxu0 0.0
  %430 = vmatprep.subr.mxu0 0.0
  %431 = vmatpush2.msra.mxu0 0.0
  %432 = vmatprep.subr.mxu0 0.0
  %433 = vmatpush2.msra.mxu0 0.0
  %434 = vmatprep.subr.mxu0 0.0
  %435 = vmatpush2.msra.mxu0 0.0
  %436 = vmatprep.subr.mxu0 0.0
  %437 = vmatpush2.msra.mxu0 0.0
  %438 = vmatprep.subr.mxu0 0.0
  %439 = vmatpush2.msra.mxu0 0.0
  %440 = vmatprep.mubr.f32.mxu0 0.0
  %441 = vmatmul.mubr.f32.gmra.mxu0 %v291
  %v442 = vpop.f32.mrf.mxu0
  %v443 = vadd.f32 %v287, %v442
  %v444 = vpop.f32.mrf.mxu0
  %v445 = vadd.f32 %v287, %v444
  %446 = vdwg.mxu0
  %v447 = vmax.f32 %v372, 0.0
  %v448 = vmax.f32 %v374, 0.0
  %v449 = vmax.f32 %v443, 0.0
  %v450 = vmax.f32 %v445, 0.0
  %455 = vrot.lane.b32.xlu0 %v447, 127
  %v456 = vpop.permute.xlu0 %455
  %457 = vrot.lane.b32.xlu0 %v448, 127
  %v458 = vpop.permute.xlu0 %457
  %459 = vrot.lane.b32.xlu0 %v449, 127
  %v460 = vpop.permute.xlu0 %459
  %461 = vrot.lane.b32.xlu0 %v450, 127
  %v462 = vpop.permute.xlu0 %461
  %v463 = vsel %vm151, %v456, %v458
  %v464 = vsel %vm151, %v458, %v460
  %v465 = vsel %vm151, %v460, %v462
  %v471 = vsel %vm151, %v462, %v456
  %v472 = vmax.f32 %v447, %v463
  %v473 = vmax.f32 %v448, %v464
  %v474 = vmax.f32 %v449, %v465
  %v475 = vmax.f32 %v450, %v471
  %480 = vrot.lane.b32.xlu0 %v472, 112
  %v481 = vpop.permute.xlu0 %480
  %482 = vrot.lane.b32.xlu0 %v473, 112
  %v483 = vpop.permute.xlu0 %482
  %484 = vrot.lane.b32.xlu0 %v474, 112
  %v485 = vpop.permute.xlu0 %484
  %486 = vrot.lane.b32.xlu0 %v475, 112
  %v487 = vpop.permute.xlu0 %486
  %v488 = vsel %vm184, %v481, %v483
  %v489 = vsel %vm184, %v483, %v485
  %v490 = vsel %vm184, %v485, %v487
  %v496 = vsel %vm184, %v487, %v481
  %v497 = vmax.f32 %v472, %v488
  %v498 = vmax.f32 %v473, %v489
  %v499 = vmax.f32 %v474, %v490
  %v500 = vmax.f32 %v475, %v496
  %v501 = vld [vmem:[%s9] sm:$0xff]
  %v502 = vld [vmem:[%s9 + $0x8] sm:$0xff]
  %v503 = vld [vmem:[%s9 + $0x10] sm:$0xff]
  %v504 = vld [vmem:[%s9 + $0x18] sm:$0xff]
  %v505 = vld [vmem:[%s9 + $0x20] sm:$0xff]
  %v506 = vld [vmem:[%s9 + $0x28] sm:$0xff]
  %v507 = vld [vmem:[%s9 + $0x30] sm:$0xff]
  %v508 = vld [vmem:[%s9 + $0x38] sm:$0xff]
  %v509 = vld [vmem:[%s9 + $0x40] sm:$0xff]
  %v510 = vld [vmem:[%s9 + $0x48] sm:$0xff]
  %v511 = vld [vmem:[%s9 + $0x50] sm:$0xff]
  %v512 = vld [vmem:[%s9 + $0x58] sm:$0xff]
  %v513 = vld [vmem:[%s9 + $0x60] sm:$0xff]
  %v514 = vld [vmem:[%s9 + $0x68] sm:$0xff]
  %v515 = vld [vmem:[%s9 + $0x70] sm:$0xff]
  %v516 = vld [vmem:[%s9 + $0x78] sm:$0xff]
  %v517 = vld [vmem:[%s9 + $0x80] sm:$0xff]
  %v518 = vld [vmem:[%s9 + $0x88] sm:$0xff]
  %v519 = vld [vmem:[%s9 + $0x90] sm:$0xff]
  %v520 = vld [vmem:[%s9 + $0x98] sm:$0xff]
  %v521 = vld [vmem:[%s9 + $0xa0] sm:$0xff]
  %v522 = vld [vmem:[%s9 + $0xa8] sm:$0xff]
  %v523 = vld [vmem:[%s9 + $0xb0] sm:$0xff]
  %v524 = vld [vmem:[%s9 + $0xb8] sm:$0xff]
  %v525 = vld [vmem:[%s9 + $0xc0] sm:$0xff]
  %v526 = vld [vmem:[%s9 + $0xc8] sm:$0xff]
  %v527 = vld [vmem:[%s9 + $0xd0] sm:$0xff]
  %v528 = vld [vmem:[%s9 + $0xd8] sm:$0xff]
  %v529 = vld [vmem:[%s9 + $0xe0] sm:$0xff]
  %v530 = vld [vmem:[%s9 + $0xe8] sm:$0xff]
  %v531 = vld [vmem:[%s9 + $0xf0] sm:$0xff]
  %v532 = vld [vmem:[%s9 + $0xf8] sm:$0xff]
  %v533 = vld [vmem:[%s9 + $0x100] sm:$0xff]
  %v534 = vld [vmem:[%s9 + $0x108] sm:$0xff]
  %v535 = vld [vmem:[%s9 + $0x110] sm:$0xff]
  %v536 = vld [vmem:[%s9 + $0x118] sm:$0xff]
  %v537 = vld [vmem:[%s9 + $0x120] sm:$0xff]
  %v538 = vld [vmem:[%s9 + $0x128] sm:$0xff]
  %v539 = vld [vmem:[%s9 + $0x130] sm:$0xff]
  %v540 = vld [vmem:[%s9 + $0x138] sm:$0xff]
  %v541 = vld [vmem:[%s9 + $0x140] sm:$0xff]
  %v542 = vld [vmem:[%s9 + $0x148] sm:$0xff]
  %v543 = vld [vmem:[%s9 + $0x150] sm:$0xff]
  %v544 = vld [vmem:[%s9 + $0x158] sm:$0xff]
  %v545 = vld [vmem:[%s9 + $0x160] sm:$0xff]
  %v546 = vld [vmem:[%s9 + $0x168] sm:$0xff]
  %v547 = vld [vmem:[%s9 + $0x170] sm:$0xff]
  %v548 = vld [vmem:[%s9 + $0x178] sm:$0xff]
  %v549 = vld [vmem:[%s9 + $0x180] sm:$0xff]
  %v550 = vld [vmem:[%s9 + $0x188] sm:$0xff]
  %v551 = vld [vmem:[%s9 + $0x190] sm:$0xff]
  %v552 = vld [vmem:[%s9 + $0x198] sm:$0xff]
  %v553 = vld [vmem:[%s9 + $0x1a0] sm:$0xff]
  %v554 = vld [vmem:[%s9 + $0x1a8] sm:$0xff]
  %v555 = vld [vmem:[%s9 + $0x1b0] sm:$0xff]
  %v556 = vld [vmem:[%s9 + $0x1b8] sm:$0xff]
  %v557 = vld [vmem:[%s9 + $0x1c0] sm:$0xff]
  %v558 = vld [vmem:[%s9 + $0x1c8] sm:$0xff]
  %v559 = vld [vmem:[%s9 + $0x1d0] sm:$0xff]
  %v560 = vld [vmem:[%s9 + $0x1d8] sm:$0xff]
  %v561 = vld [vmem:[%s9 + $0x1e0] sm:$0xff]
  %v562 = vld [vmem:[%s9 + $0x1e8] sm:$0xff]
  %v563 = vld [vmem:[%s9 + $0x1f0] sm:$0xff]
  %v564 = vld [vmem:[%s9 + $0x1f8] sm:$0xff]
  %565 = vmatprep.subr.mxu0 0.0
  %566 = vmatpush1.msra.mxu0 %v516
  %567 = vmatprep.subr.mxu0 0.0
  %568 = vmatpush1.msra.mxu0 %v515
  %569 = vmatprep.subr.mxu0 0.0
  %570 = vmatpush1.msra.mxu0 %v514
  %571 = vmatprep.subr.mxu0 0.0
  %572 = vmatpush1.msra.mxu0 %v513
  %573 = vmatprep.subr.mxu0 0.0
  %574 = vmatpush1.msra.mxu0 %v512
  %575 = vmatprep.subr.mxu0 0.0
  %576 = vmatpush1.msra.mxu0 %v511
  %577 = vmatprep.subr.mxu0 0.0
  %578 = vmatpush1.msra.mxu0 %v510
  %579 = vmatprep.subr.mxu0 0.0
  %580 = vmatpush1.msra.mxu0 %v509
  %581 = vmatprep.subr.mxu0 0.0
  %582 = vmatpush1.msra.mxu0 %v508
  %583 = vmatprep.subr.mxu0 0.0
  %584 = vmatpush1.msra.mxu0 %v507
  %585 = vmatprep.subr.mxu0 0.0
  %586 = vmatpush1.msra.mxu0 %v506
  %587 = vmatprep.subr.mxu0 0.0
  %588 = vmatpush1.msra.mxu0 %v505
  %589 = vmatprep.subr.mxu0 0.0
  %590 = vmatpush1.msra.mxu0 %v504
  %591 = vmatprep.subr.mxu0 0.0
  %592 = vmatpush1.msra.mxu0 %v503
  %593 = vmatprep.subr.mxu0 0.0
  %594 = vmatpush1.msra.mxu0 %v502
  %595 = vmatprep.subr.mxu0 0.0
  %596 = vmatpush1.msra.mxu0 %v501
  %597 = vmatprep.subr.mxu0 0.0
  %598 = vmatpush2.msra.mxu0 %v532
  %599 = vmatprep.subr.mxu0 0.0
  %600 = vmatpush2.msra.mxu0 %v531
  %601 = vmatprep.subr.mxu0 0.0
  %602 = vmatpush2.msra.mxu0 %v530
  %603 = vmatprep.subr.mxu0 0.0
  %604 = vmatpush2.msra.mxu0 %v529
  %605 = vmatprep.subr.mxu0 0.0
  %606 = vmatpush2.msra.mxu0 %v528
  %607 = vmatprep.subr.mxu0 0.0
  %608 = vmatpush2.msra.mxu0 %v527
  %609 = vmatprep.subr.mxu0 0.0
  %610 = vmatpush2.msra.mxu0 %v526
  %611 = vmatprep.subr.mxu0 0.0
  %612 = vmatpush2.msra.mxu0 %v525
  %613 = vmatprep.subr.mxu0 0.0
  %614 = vmatpush2.msra.mxu0 %v524
  %615 = vmatprep.subr.mxu0 0.0
  %616 = vmatpush2.msra.mxu0 %v523
  %617 = vmatprep.subr.mxu0 0.0
  %618 = vmatpush2.msra.mxu0 %v522
  %619 = vmatprep.subr.mxu0 0.0
  %620 = vmatpush2.msra.mxu0 %v521
  %621 = vmatprep.subr.mxu0 0.0
  %622 = vmatpush2.msra.mxu0 %v520
  %623 = vmatprep.subr.mxu0 0.0
  %624 = vmatpush2.msra.mxu0 %v519
  %625 = vmatprep.subr.mxu0 0.0
  %626 = vmatpush2.msra.mxu0 %v518
  %627 = vmatprep.subr.mxu0 0.0
  %628 = vmatpush2.msra.mxu0 %v517
  %629 = vmatprep.mubr.f32.mxu0 %v498
  %630 = vmatmul.mubr.f32.gmra.mxu0 %v497
  %v631 = vpop.f32.mrf.mxu0
  %v632 = vadd.f32 0.0, %v631
  %v633 = vpop.f32.mrf.mxu0
  %634 = vdwg.mxu0
  %635 = vmatprep.subr.mxu0 0.0
  %636 = vmatpush1.msra.mxu0 %v548
  %637 = vmatprep.subr.mxu0 0.0
  %638 = vmatpush1.msra.mxu0 %v547
  %639 = vmatprep.subr.mxu0 0.0
  %640 = vmatpush1.msra.mxu0 %v546
  %641 = vmatprep.subr.mxu0 0.0
  %642 = vmatpush1.msra.mxu0 %v545
  %643 = vmatprep.subr.mxu0 0.0
  %644 = vmatpush1.msra.mxu0 %v544
  %645 = vmatprep.subr.mxu0 0.0
  %646 = vmatpush1.msra.mxu0 %v543
  %647 = vmatprep.subr.mxu0 0.0
  %648 = vmatpush1.msra.mxu0 %v542
  %649 = vmatprep.subr.mxu0 0.0
  %650 = vmatpush1.msra.mxu0 %v541
  %651 = vmatprep.subr.mxu0 0.0
  %652 = vmatpush1.msra.mxu0 %v540
  %653 = vmatprep.subr.mxu0 0.0
  %654 = vmatpush1.msra.mxu0 %v539
  %655 = vmatprep.subr.mxu0 0.0
  %656 = vmatpush1.msra.mxu0 %v538
  %657 = vmatprep.subr.mxu0 0.0
  %658 = vmatpush1.msra.mxu0 %v537
  %659 = vmatprep.subr.mxu0 0.0
  %660 = vmatpush1.msra.mxu0 %v536
  %661 = vmatprep.subr.mxu0 0.0
  %662 = vmatpush1.msra.mxu0 %v535
  %663 = vmatprep.subr.mxu0 0.0
  %664 = vmatpush1.msra.mxu0 %v534
  %665 = vmatprep.subr.mxu0 0.0
  %666 = vmatpush1.msra.mxu0 %v533
  %667 = vmatprep.subr.mxu0 0.0
  %668 = vmatpush2.msra.mxu0 %v564
  %669 = vmatprep.subr.mxu0 0.0
  %670 = vmatpush2.msra.mxu0 %v563
  %671 = vmatprep.subr.mxu0 0.0
  %672 = vmatpush2.msra.mxu0 %v562
  %673 = vmatprep.subr.mxu0 0.0
  %674 = vmatpush2.msra.mxu0 %v561
  %675 = vmatprep.subr.mxu0 0.0
  %676 = vmatpush2.msra.mxu0 %v560
  %677 = vmatprep.subr.mxu0 0.0
  %678 = vmatpush2.msra.mxu0 %v559
  %679 = vmatprep.subr.mxu0 0.0
  %680 = vmatpush2.msra.mxu0 %v558
  %681 = vmatprep.subr.mxu0 0.0
  %682 = vmatpush2.msra.mxu0 %v557
  %683 = vmatprep.subr.mxu0 0.0
  %684 = vmatpush2.msra.mxu0 %v556
  %685 = vmatprep.subr.mxu0 0.0
  %686 = vmatpush2.msra.mxu0 %v555
  %687 = vmatprep.subr.mxu0 0.0
  %688 = vmatpush2.msra.mxu0 %v554
  %689 = vmatprep.subr.mxu0 0.0
  %690 = vmatpush2.msra.mxu0 %v553
  %691 = vmatprep.subr.mxu0 0.0
  %692 = vmatpush2.msra.mxu0 %v552
  %693 = vmatprep.subr.mxu0 0.0
  %694 = vmatpush2.msra.mxu0 %v551
  %695 = vmatprep.subr.mxu0 0.0
  %696 = vmatpush2.msra.mxu0 %v550
  %697 = vmatprep.subr.mxu0 0.0
  %698 = vmatpush2.msra.mxu0 %v549
  %699 = vmatprep.mubr.f32.mxu0 %v500
  %700 = vmatmul.mubr.f32.gmra.mxu0 %v499
  %v701 = vpop.f32.mrf.mxu0
  %v702 = vadd.f32 %v632, %v701
  %v703 = vpop.f32.mrf.mxu0
  %704 = vdwg.mxu0
  %v705 = vld [vmem:[%s3] sm:$0xff]
  %v706 = vld [vmem:[%s3 + $0x8] sm:$0xff]
  %v707 = vld [vmem:[%s4] sm:$0xff]
  %v708 = vld [vmem:[%s4 + $0x8] sm:$0xff]
  %v709 = vld [vmem:[%s8] sm:$0xff]
  %v710 = vld [vmem:[%s8 + $0x8] sm:$0xff]
  %v711 = vld [vmem:[%s8 + $0x10] sm:$0xff]
  %v712 = vld [vmem:[%s8 + $0x18] sm:$0xff]
  %v713 = vld [vmem:[%s8 + $0x20] sm:$0xff]
  %v714 = vld [vmem:[%s8 + $0x28] sm:$0xff]
  %v715 = vld [vmem:[%s8 + $0x30] sm:$0xff]
  %v716 = vld [vmem:[%s8 + $0x38] sm:$0xff]
  %v717 = vld [vmem:[%s8 + $0x40] sm:$0xff]
  %719 = vrot.lane.b32.xlu0 %v702, 9
  %v720 = vpop.permute.xlu0 %719
  %722 = vrot.lane.b32.xlu0 %v702, 8
  %v723 = vpop.permute.xlu0 %722
  %725 = vrot.lane.b32.xlu0 %v702, 7
  %v726 = vpop.permute.xlu0 %725
  %728 = vrot.lane.b32.xlu0 %v702, 1
  %v729 = vpop.permute.xlu0 %728
  %731 = vrot.lane.b32.xlu0 %v702, 127
  %v732 = vpop.permute.xlu0 %731
  %734 = vrot.lane.b32.xlu0 %v702, 121
  %v735 = vpop.permute.xlu0 %734
  %737 = vrot.lane.b32.xlu0 %v702, 120
  %v738 = vpop.permute.xlu0 %737
  %740 = vrot.lane.b32.xlu0 %v702, 119
  %v741 = vpop.permute.xlu0 %740
  %v743 = vmul.f32 %v720, %v709
  %v744 = vmul.f32 %v723, %v710
  %v745 = vmul.f32 %v726, %v711
  %v746 = vmul.f32 %v729, %v712
  %v747 = vmul.f32 %v702, %v713
  %v748 = vmul.f32 %v732, %v714
  %v749 = vmul.f32 %v735, %v715
  %v750 = vmul.f32 %v738, %v716
  %v751 = vmul.f32 %v741, %v717
  %753 = vset.pattern.permute.xlu0 0
  %754 = vperm.xlu0 %753, %v707
  %v755 = vpop.permute.xlu0 %754
  %758 = vset.pattern.permute.xlu0 0
  %759 = vperm.xlu0 %758, %v708
  %v760 = vpop.permute.xlu0 %759
  %vm762 = vcmask 588800
  %v764 = vsel %vm762, %v705, 0
  %v767 = vsel %vm762, %v706, 0
  %769 = vmatprep.subr.mxu0 0.0
  %770 = vmatpush1.msra.mxu0 0.0
  %771 = vmatprep.subr.mxu0 0.0
  %772 = vmatpush1.msra.mxu0 0.0
  %773 = vmatprep.subr.mxu0 0.0
  %774 = vmatpush1.msra.mxu0 0.0
  %775 = vmatprep.subr.mxu0 0.0
  %776 = vmatpush1.msra.mxu0 0.0
  %777 = vmatprep.subr.mxu0 0.0
  %778 = vmatpush1.msra.mxu0 0.0
  %779 = vmatprep.subr.mxu0 0.0
  %780 = vmatpush1.msra.mxu0 0.0
  %781 = vmatprep.subr.mxu0 0.0
  %782 = vmatpush1.msra.mxu0 0.0
  %783 = vmatprep.subr.mxu0 0.0
  %784 = vmatpush1.msra.mxu0 %v751
  %785 = vmatprep.subr.mxu0 0.0
  %786 = vmatpush1.msra.mxu0 %v750
  %787 = vmatprep.subr.mxu0 0.0
  %788 = vmatpush1.msra.mxu0 %v749
  %789 = vmatprep.subr.mxu0 0.0
  %790 = vmatpush1.msra.mxu0 %v748
  %791 = vmatprep.subr.mxu0 0.0
  %792 = vmatpush1.msra.mxu0 %v747
  %793 = vmatprep.subr.mxu0 0.0
  %794 = vmatpush1.msra.mxu0 %v746
  %795 = vmatprep.subr.mxu0 0.0
  %796 = vmatpush1.msra.mxu0 %v745
  %797 = vmatprep.subr.mxu0 0.0
  %798 = vmatpush1.msra.mxu0 %v744
  %799 = vmatprep.subr.mxu0 0.0
  %800 = vmatpush1.msra.mxu0 %v743
  %801 = vmatprep.subr.mxu0 0.0
  %802 = vmatpush2.msra.mxu0 0.0
  %803 = vmatprep.subr.mxu0 0.0
  %804 = vmatpush2.msra.mxu0 0.0
  %805 = vmatprep.subr.mxu0 0.0
  %806 = vmatpush2.msra.mxu0 0.0
  %807 = vmatprep.subr.mxu0 0.0
  %808 = vmatpush2.msra.mxu0 0.0
  %809 = vmatprep.subr.mxu0 0.0
  %810 = vmatpush2.msra.mxu0 0.0
  %811 = vmatprep.subr.mxu0 0.0
  %812 = vmatpush2.msra.mxu0 0.0
  %813 = vmatprep.subr.mxu0 0.0
  %814 = vmatpush2.msra.mxu0 0.0
  %815 = vmatprep.subr.mxu0 0.0
  %816 = vmatpush2.msra.mxu0 0.0
  %817 = vmatprep.subr.mxu0 0.0
  %818 = vmatpush2.msra.mxu0 0.0
  %819 = vmatprep.subr.mxu0 0.0
  %820 = vmatpush2.msra.mxu0 0.0
  %821 = vmatprep.subr.mxu0 0.0
  %822 = vmatpush2.msra.mxu0 0.0
  %823 = vmatprep.subr.mxu0 0.0
  %824 = vmatpush2.msra.mxu0 0.0
  %825 = vmatprep.subr.mxu0 0.0
  %826 = vmatpush2.msra.mxu0 0.0
  %827 = vmatprep.subr.mxu0 0.0
  %828 = vmatpush2.msra.mxu0 0.0
  %829 = vmatprep.subr.mxu0 0.0
  %830 = vmatpush2.msra.mxu0 0.0
  %831 = vmatprep.subr.mxu0 0.0
  %832 = vmatpush2.msra.mxu0 0.0
  %833 = vmatprep.mubr.f32.mxu0 0.0
  %834 = vmatmul.mubr.f32.gmra.mxu0 %v764
  %v835 = vpop.f32.mrf.mxu0
  %v836 = vadd.f32 %v755, %v835
  %v837 = vpop.f32.mrf.mxu0
  %838 = vmatprep.mubr.f32.mxu0 0.0
  %839 = vmatmul.mubr.f32.gmra.mxu0 %v767
  %v840 = vpop.f32.mrf.mxu0
  %v841 = vadd.f32 %v760, %v840
  %v842 = vpop.f32.mrf.mxu0
  %843 = vdwg.mxu0
  %v844 = vmax.f32 %v836, 0.0
  %v845 = vmax.f32 %v841, 0.0
  %846 = vst [vmem:[%s14] sm:$0xff] %v844
  %847 = vst [vmem:[%s14 + $0x8] sm:$0xff] %v845
  %850 = vrot.lane.b32.xlu0 %v844, 127
  %v851 = vpop.permute.xlu0 %850
  %852 = vrot.lane.b32.xlu0 %v845, 127
  %v853 = vpop.permute.xlu0 %852
  %v856 = vmax.f32 %v844, %v851
  %v857 = vmax.f32 %v845, %v853
  %860 = vrot.lane.b32.xlu0 %v856, 120
  %v861 = vpop.permute.xlu0 %860
  %862 = vrot.lane.b32.xlu0 %v857, 120
  %v863 = vpop.permute.xlu0 %862
  %v866 = vmax.f32 %v856, %v861
  %v867 = vmax.f32 %v857, %v863
  %v868 = vld [vmem:[%s10] sm:$0xff]
  %v869 = vld [vmem:[%s10 + $0x8] sm:$0xff]
  %v870 = vld [vmem:[%s10 + $0x10] sm:$0xff]
  %v871 = vld [vmem:[%s10 + $0x18] sm:$0xff]
  %v872 = vld [vmem:[%s10 + $0x20] sm:$0xff]
  %v873 = vld [vmem:[%s10 + $0x28] sm:$0xff]
  %v874 = vld [vmem:[%s10 + $0x30] sm:$0xff]
  %v875 = vld [vmem:[%s10 + $0x38] sm:$0xff]
  %v876 = vld [vmem:[%s10 + $0x40] sm:$0xff]
  %v877 = vld [vmem:[%s10 + $0x48] sm:$0xff]
  %v878 = vld [vmem:[%s10 + $0x50] sm:$0xff]
  %v879 = vld [vmem:[%s10 + $0x58] sm:$0xff]
  %v880 = vld [vmem:[%s10 + $0x60] sm:$0xff]
  %v881 = vld [vmem:[%s10 + $0x68] sm:$0xff]
  %v882 = vld [vmem:[%s10 + $0x70] sm:$0xff]
  %v883 = vld [vmem:[%s10 + $0x78] sm:$0xff]
  %884 = vmatprep.subr.mxu0 0.0
  %885 = vmatpush1.msra.mxu0 %v883
  %886 = vmatprep.subr.mxu0 0.0
  %887 = vmatpush1.msra.mxu0 %v882
  %888 = vmatprep.subr.mxu0 0.0
  %889 = vmatpush1.msra.mxu0 %v881
  %890 = vmatprep.subr.mxu0 0.0
  %891 = vmatpush1.msra.mxu0 %v880
  %892 = vmatprep.subr.mxu0 0.0
  %893 = vmatpush1.msra.mxu0 %v879
  %894 = vmatprep.subr.mxu0 0.0
  %895 = vmatpush1.msra.mxu0 %v878
  %896 = vmatprep.subr.mxu0 0.0
  %897 = vmatpush1.msra.mxu0 %v877
  %898 = vmatprep.subr.mxu0 0.0
  %899 = vmatpush1.msra.mxu0 %v876
  %900 = vmatprep.subr.mxu0 0.0
  %901 = vmatpush1.msra.mxu0 %v875
  %902 = vmatprep.subr.mxu0 0.0
  %903 = vmatpush1.msra.mxu0 %v874
  %904 = vmatprep.subr.mxu0 0.0
  %905 = vmatpush1.msra.mxu0 %v873
  %906 = vmatprep.subr.mxu0 0.0
  %907 = vmatpush1.msra.mxu0 %v872
  %908 = vmatprep.subr.mxu0 0.0
  %909 = vmatpush1.msra.mxu0 %v871
  %910 = vmatprep.subr.mxu0 0.0
  %911 = vmatpush1.msra.mxu0 %v870
  %912 = vmatprep.subr.mxu0 0.0
  %913 = vmatpush1.msra.mxu0 %v869
  %914 = vmatprep.subr.mxu0 0.0
  %915 = vmatpush1.msra.mxu0 %v868
  %916 = vmatprep.subr.mxu0 0.0
  %917 = vmatpush2.msra.mxu0 0.0
  %918 = vmatprep.subr.mxu0 0.0
  %919 = vmatpush2.msra.mxu0 0.0
  %920 = vmatprep.subr.mxu0 0.0
  %921 = vmatpush2.msra.mxu0 0.0
  %922 = vmatprep.subr.mxu0 0.0
  %923 = vmatpush2.msra.mxu0 0.0
  %924 = vmatprep.subr.mxu0 0.0
  %925 = vmatpush2.msra.mxu0 0.0
  %926 = vmatprep.subr.mxu0 0.0
  %927 = vmatpush2.msra.mxu0 0.0
  %928 = vmatprep.subr.mxu0 0.0
  %929 = vmatpush2.msra.mxu0 0.0
  %930 = vmatprep.subr.mxu0 0.0
  %931 = vmatpush2.msra.mxu0 0.0
  %932 = vmatprep.subr.mxu0 0.0
  %933 = vmatpush2.msra.mxu0 0.0
  %934 = vmatprep.subr.mxu0 0.0
  %935 = vmatpush2.msra.mxu0 0.0
  %936 = vmatprep.subr.mxu0 0.0
  %937 = vmatpush2.msra.mxu0 0.0
  %938 = vmatprep.subr.mxu0 0.0
  %939 = vmatpush2.msra.mxu0 0.0
  %940 = vmatprep.subr.mxu0 0.0
  %941 = vmatpush2.msra.mxu0 0.0
  %942 = vmatprep.subr.mxu0 0.0
  %943 = vmatpush2.msra.mxu0 0.0
  %944 = vmatprep.subr.mxu0 0.0
  %945 = vmatpush2.msra.mxu0 0.0
  %946 = vmatprep.subr.mxu0 0.0
  %947 = vmatpush2.msra.mxu0 0.0
  %948 = vmatprep.mubr.f32.mxu0 0.0
  %949 = vmatmul.mubr.f32.gmra.mxu0 %v866
  %v950 = vpop.f32.mrf.mxu0
  %v951 = vadd.f32 0.0, %v950
  %v952 = vpop.f32.mrf.mxu0
  %953 = vmatprep.mubr.f32.mxu0 0.0
  %954 = vmatmul.mubr.f32.gmra.mxu0 %v867
  %v955 = vpop.f32.mrf.mxu0
  %v956 = vadd.f32 0.0, %v955
  %v957 = vpop.f32.mrf.mxu0
  %958 = vdwg.mxu0
  %v959 = vld [vmem:[%s11] sm:$0xff]
  %v960 = vld [vmem:[%s11 + $0x8] sm:$0xff]
  %v961 = vld [vmem:[%s11 + $0x10] sm:$0xff]
  %v962 = vld [vmem:[%s11 + $0x18] sm:$0xff]
  %v963 = vld [vmem:[%s11 + $0x20] sm:$0xff]
  %v964 = vld [vmem:[%s11 + $0x28] sm:$0xff]
  %v965 = vld [vmem:[%s11 + $0x30] sm:$0xff]
  %v966 = vld [vmem:[%s11 + $0x38] sm:$0xff]
  %v967 = vld [vmem:[%s11 + $0x40] sm:$0xff]
  %v968 = vld [vmem:[%s11 + $0x48] sm:$0xff]
  %v969 = vld [vmem:[%s11 + $0x50] sm:$0xff]
  %v970 = vld [vmem:[%s11 + $0x58] sm:$0xff]
  %v971 = vld [vmem:[%s11 + $0x60] sm:$0xff]
  %v972 = vld [vmem:[%s11 + $0x68] sm:$0xff]
  %v973 = vld [vmem:[%s11 + $0x70] sm:$0xff]
  %v974 = vld [vmem:[%s11 + $0x78] sm:$0xff]
  %v975 = vld [vmem:[%s11 + $0x80] sm:$0xff]
  %v976 = vld [vmem:[%s11 + $0x88] sm:$0xff]
  %v977 = vld [vmem:[%s11 + $0x90] sm:$0xff]
  %v978 = vld [vmem:[%s11 + $0x98] sm:$0xff]
  %v979 = vld [vmem:[%s11 + $0xa0] sm:$0xff]
  %v980 = vld [vmem:[%s11 + $0xa8] sm:$0xff]
  %v981 = vld [vmem:[%s11 + $0xb0] sm:$0xff]
  %v982 = vld [vmem:[%s11 + $0xb8] sm:$0xff]
  %v983 = vld [vmem:[%s11 + $0xc0] sm:$0xff]
  %v984 = vld [vmem:[%s11 + $0xc8] sm:$0xff]
  %v985 = vld [vmem:[%s11 + $0xd0] sm:$0xff]
  %v986 = vld [vmem:[%s11 + $0xd8] sm:$0xff]
  %v987 = vld [vmem:[%s11 + $0xe0] sm:$0xff]
  %v988 = vld [vmem:[%s11 + $0xe8] sm:$0xff]
  %v989 = vld [vmem:[%s11 + $0xf0] sm:$0xff]
  %v990 = vld [vmem:[%s11 + $0xf8] sm:$0xff]
  %v992 = vsel %vm104, %v959, 0
  %v995 = vsel %vm104, %v960, 0
  %v998 = vsel %vm104, %v961, 0
  %v1001 = vsel %vm104, %v962, 0
  %v1004 = vsel %vm104, %v963, 0
  %v1007 = vsel %vm104, %v964, 0
  %v1010 = vsel %vm104, %v965, 0
  %v1013 = vsel %vm104, %v966, 0
  %v1016 = vsel %vm104, %v967, 0
  %v1019 = vsel %vm104, %v968, 0
  %v1022 = vsel %vm104, %v969, 0
  %v1025 = vsel %vm104, %v970, 0
  %v1028 = vsel %vm104, %v971, 0
  %v1031 = vsel %vm104, %v972, 0
  %v1034 = vsel %vm104, %v973, 0
  %v1037 = vsel %vm104, %v974, 0
  %v1040 = vsel %vm104, %v975, 0
  %v1043 = vsel %vm104, %v976, 0
  %v1046 = vsel %vm104, %v977, 0
  %v1049 = vsel %vm104, %v978, 0
  %v1052 = vsel %vm104, %v979, 0
  %v1055 = vsel %vm104, %v980, 0
  %v1058 = vsel %vm104, %v981, 0
  %v1061 = vsel %vm104, %v982, 0
  %v1064 = vsel %vm104, %v983, 0
  %v1067 = vsel %vm104, %v984, 0
  %v1070 = vsel %vm104, %v985, 0
  %v1073 = vsel %vm104, %v986, 0
  %v1076 = vsel %vm104, %v987, 0
  %v1079 = vsel %vm104, %v988, 0
  %v1082 = vsel %vm104, %v989, 0
  %v1085 = vsel %vm104, %v990, 0
  %1087 = vmatprep.subr.mxu0 0.0
  %1088 = vmatpush1.msra.mxu0 0.0
  %1089 = vmatprep.subr.mxu0 0.0
  %1090 = vmatpush1.msra.mxu0 0.0
  %1091 = vmatprep.subr.mxu0 0.0
  %1092 = vmatpush1.msra.mxu0 0.0
  %1093 = vmatprep.subr.mxu0 0.0
  %1094 = vmatpush1.msra.mxu0 0.0
  %1095 = vmatprep.subr.mxu0 0.0
  %1096 = vmatpush1.msra.mxu0 0.0
  %1097 = vmatprep.subr.mxu0 0.0
  %1098 = vmatpush1.msra.mxu0 0.0
  %1099 = vmatprep.subr.mxu0 0.0
  %1100 = vmatpush1.msra.mxu0 0.0
  %1101 = vmatprep.subr.mxu0 0.0
  %1102 = vmatpush1.msra.mxu0 0.0
  %1103 = vmatprep.subr.mxu0 0.0
  %1104 = vmatpush1.msra.mxu0 0.0
  %1105 = vmatprep.subr.mxu0 0.0
  %1106 = vmatpush1.msra.mxu0 0.0
  %1107 = vmatprep.subr.mxu0 0.0
  %1108 = vmatpush1.msra.mxu0 0.0
  %1109 = vmatprep.subr.mxu0 0.0
  %1110 = vmatpush1.msra.mxu0 0.0
  %1111 = vmatprep.subr.mxu0 0.0
  %1112 = vmatpush1.msra.mxu0 0.0
  %1113 = vmatprep.subr.mxu0 0.0
  %1114 = vmatpush1.msra.mxu0 0.0
  %1115 = vmatprep.subr.mxu0 0.0
  %1116 = vmatpush1.msra.mxu0 %v956
  %1117 = vmatprep.subr.mxu0 0.0
  %1118 = vmatpush1.msra.mxu0 %v951
  %1119 = vmatprep.subr.mxu0 0.0
  %1120 = vmatpush2.msra.mxu0 0.0
  %1121 = vmatprep.subr.mxu0 0.0
  %1122 = vmatpush2.msra.mxu0 0.0
  %1123 = vmatprep.subr.mxu0 0.0
  %1124 = vmatpush2.msra.mxu0 0.0
  %1125 = vmatprep.subr.mxu0 0.0
  %1126 = vmatpush2.msra.mxu0 0.0
  %1127 = vmatprep.subr.mxu0 0.0
  %1128 = vmatpush2.msra.mxu0 0.0
  %1129 = vmatprep.subr.mxu0 0.0
  %1130 = vmatpush2.msra.mxu0 0.0
  %1131 = vmatprep.subr.mxu0 0.0
  %1132 = vmatpush2.msra.mxu0 0.0
  %1133 = vmatprep.subr.mxu0 0.0
  %1134 = vmatpush2.msra.mxu0 0.0
  %1135 = vmatprep.subr.mxu0 0.0
  %1136 = vmatpush2.msra.mxu0 0.0
  %1137 = vmatprep.subr.mxu0 0.0
  %1138 = vmatpush2.msra.mxu0 0.0
  %1139 = vmatprep.subr.mxu0 0.0
  %1140 = vmatpush2.msra.mxu0 0.0
  %1141 = vmatprep.subr.mxu0 0.0
  %1142 = vmatpush2.msra.mxu0 0.0
  %1143 = vmatprep.subr.mxu0 0.0
  %1144 = vmatpush2.msra.mxu0 0.0
  %1145 = vmatprep.subr.mxu0 0.0
  %1146 = vmatpush2.msra.mxu0 0.0
  %1147 = vmatprep.subr.mxu0 0.0
  %1148 = vmatpush2.msra.mxu0 0.0
  %1149 = vmatprep.subr.mxu0 0.0
  %1150 = vmatpush2.msra.mxu0 0.0
  %1151 = vmatprep.mubr.f32.mxu0 0.0
  %1152 = vmatmul.mubr.f32.gmra.mxu0 %v992
  %v1153 = vpop.f32.mrf.mxu0
  %v1154 = vadd.f32 0.0, %v1153
  %v1155 = vpop.f32.mrf.mxu0
  %1156 = vmatprep.mubr.f32.mxu0 0.0
  %1157 = vmatmul.mubr.f32.gmra.mxu0 %v995
  %v1158 = vpop.f32.mrf.mxu0
  %v1159 = vadd.f32 0.0, %v1158
  %v1160 = vpop.f32.mrf.mxu0
  %1161 = vmatprep.mubr.f32.mxu0 0.0
  %1162 = vmatmul.mubr.f32.gmra.mxu0 %v998
  %v1163 = vpop.f32.mrf.mxu0
  %v1164 = vadd.f32 0.0, %v1163
  %v1165 = vpop.f32.mrf.mxu0
  %1166 = vmatprep.mubr.f32.mxu0 0.0
  %1167 = vmatmul.mubr.f32.gmra.mxu0 %v1001
  %v1168 = vpop.f32.mrf.mxu0
  %v1169 = vadd.f32 0.0, %v1168
  %v1170 = vpop.f32.mrf.mxu0
  %1171 = vmatprep.mubr.f32.mxu0 0.0
  %1172 = vmatmul.mubr.f32.gmra.mxu0 %v1004
  %v1173 = vpop.f32.mrf.mxu0
  %v1174 = vadd.f32 0.0, %v1173
  %v1175 = vpop.f32.mrf.mxu0
  %1176 = vmatprep.mubr.f32.mxu0 0.0
  %1177 = vmatmul.mubr.f32.gmra.mxu0 %v1007
  %v1178 = vpop.f32.mrf.mxu0
  %v1179 = vadd.f32 0.0, %v1178
  %v1180 = vpop.f32.mrf.mxu0
  %1181 = vmatprep.mubr.f32.mxu0 0.0
  %1182 = vmatmul.mubr.f32.gmra.mxu0 %v1010
  %v1183 = vpop.f32.mrf.mxu0
  %v1184 = vadd.f32 0.0, %v1183
  %v1185 = vpop.f32.mrf.mxu0
  %1186 = vmatprep.mubr.f32.mxu0 0.0
  %1187 = vmatmul.mubr.f32.gmra.mxu0 %v1013
  %v1188 = vpop.f32.mrf.mxu0
  %v1189 = vadd.f32 0.0, %v1188
  %v1190 = vpop.f32.mrf.mxu0
  %1191 = vmatprep.mubr.f32.mxu0 0.0
  %1192 = vmatmul.mubr.f32.gmra.mxu0 %v1016
  %v1193 = vpop.f32.mrf.mxu0
  %v1194 = vadd.f32 0.0, %v1193
  %v1195 = vpop.f32.mrf.mxu0
  %1196 = vmatprep.mubr.f32.mxu0 0.0
  %1197 = vmatmul.mubr.f32.gmra.mxu0 %v1019
  %v1198 = vpop.f32.mrf.mxu0
  %v1199 = vadd.f32 0.0, %v1198
  %v1200 = vpop.f32.mrf.mxu0
  %1201 = vmatprep.mubr.f32.mxu0 0.0
  %1202 = vmatmul.mubr.f32.gmra.mxu0 %v1022
  %v1203 = vpop.f32.mrf.mxu0
  %v1204 = vadd.f32 0.0, %v1203
  %v1205 = vpop.f32.mrf.mxu0
  %1206 = vmatprep.mubr.f32.mxu0 0.0
  %1207 = vmatmul.mubr.f32.gmra.mxu0 %v1025
  %v1208 = vpop.f32.mrf.mxu0
  %v1209 = vadd.f32 0.0, %v1208
  %v1210 = vpop.f32.mrf.mxu0
  %1211 = vmatprep.mubr.f32.mxu0 0.0
  %1212 = vmatmul.mubr.f32.gmra.mxu0 %v1028
  %v1213 = vpop.f32.mrf.mxu0
  %v1214 = vadd.f32 0.0, %v1213
  %v1215 = vpop.f32.mrf.mxu0
  %1216 = vmatprep.mubr.f32.mxu0 0.0
  %1217 = vmatmul.mubr.f32.gmra.mxu0 %v1031
  %v1218 = vpop.f32.mrf.mxu0
  %v1219 = vadd.f32 0.0, %v1218
  %v1220 = vpop.f32.mrf.mxu0
  %1221 = vmatprep.mubr.f32.mxu0 0.0
  %1222 = vmatmul.mubr.f32.gmra.mxu0 %v1034
  %v1223 = vpop.f32.mrf.mxu0
  %v1224 = vadd.f32 0.0, %v1223
  %v1225 = vpop.f32.mrf.mxu0
  %1226 = vmatprep.mubr.f32.mxu0 0.0
  %1227 = vmatmul.mubr.f32.gmra.mxu0 %v1037
  %v1228 = vpop.f32.mrf.mxu0
  %v1229 = vadd.f32 0.0, %v1228
  %v1230 = vpop.f32.mrf.mxu0
  %1231 = vmatprep.mubr.f32.mxu0 0.0
  %1232 = vmatmul.mubr.f32.gmra.mxu0 %v1040
  %v1233 = vpop.f32.mrf.mxu0
  %v1234 = vadd.f32 0.0, %v1233
  %v1235 = vpop.f32.mrf.mxu0
  %1236 = vmatprep.mubr.f32.mxu0 0.0
  %1237 = vmatmul.mubr.f32.gmra.mxu0 %v1043
  %v1238 = vpop.f32.mrf.mxu0
  %v1239 = vadd.f32 0.0, %v1238
  %v1240 = vpop.f32.mrf.mxu0
  %1241 = vmatprep.mubr.f32.mxu0 0.0
  %1242 = vmatmul.mubr.f32.gmra.mxu0 %v1046
  %v1243 = vpop.f32.mrf.mxu0
  %v1244 = vadd.f32 0.0, %v1243
  %v1245 = vpop.f32.mrf.mxu0
  %1246 = vmatprep.mubr.f32.mxu0 0.0
  %1247 = vmatmul.mubr.f32.gmra.mxu0 %v1049
  %v1248 = vpop.f32.mrf.mxu0
  %v1249 = vadd.f32 0.0, %v1248
  %v1250 = vpop.f32.mrf.mxu0
  %1251 = vmatprep.mubr.f32.mxu0 0.0
  %1252 = vmatmul.mubr.f32.gmra.mxu0 %v1052
  %v1253 = vpop.f32.mrf.mxu0
  %v1254 = vadd.f32 0.0, %v1253
  %v1255 = vpop.f32.mrf.mxu0
  %1256 = vmatprep.mubr.f32.mxu0 0.0
  %1257 = vmatmul.mubr.f32.gmra.mxu0 %v1055
  %v1258 = vpop.f32.mrf.mxu0
  %v1259 = vadd.f32 0.0, %v1258
  %v1260 = vpop.f32.mrf.mxu0
  %1261 = vmatprep.mubr.f32.mxu0 0.0
  %1262 = vmatmul.mubr.f32.gmra.mxu0 %v1058
  %v1263 = vpop.f32.mrf.mxu0
  %v1264 = vadd.f32 0.0, %v1263
  %v1265 = vpop.f32.mrf.mxu0
  %1266 = vmatprep.mubr.f32.mxu0 0.0
  %1267 = vmatmul.mubr.f32.gmra.mxu0 %v1061
  %v1268 = vpop.f32.mrf.mxu0
  %v1269 = vadd.f32 0.0, %v1268
  %v1270 = vpop.f32.mrf.mxu0
  %1271 = vmatprep.mubr.f32.mxu0 0.0
  %1272 = vmatmul.mubr.f32.gmra.mxu0 %v1064
  %v1273 = vpop.f32.mrf.mxu0
  %v1274 = vadd.f32 0.0, %v1273
  %v1275 = vpop.f32.mrf.mxu0
  %1276 = vmatprep.mubr.f32.mxu0 0.0
  %1277 = vmatmul.mubr.f32.gmra.mxu0 %v1067
  %v1278 = vpop.f32.mrf.mxu0
  %v1279 = vadd.f32 0.0, %v1278
  %v1280 = vpop.f32.mrf.mxu0
  %1281 = vmatprep.mubr.f32.mxu0 0.0
  %1282 = vmatmul.mubr.f32.gmra.mxu0 %v1070
  %v1283 = vpop.f32.mrf.mxu0
  %v1284 = vadd.f32 0.0, %v1283
  %v1285 = vpop.f32.mrf.mxu0
  %1286 = vmatprep.mubr.f32.mxu0 0.0
  %1287 = vmatmul.mubr.f32.gmra.mxu0 %v1073
  %v1288 = vpop.f32.mrf.mxu0
  %v1289 = vadd.f32 0.0, %v1288
  %v1290 = vpop.f32.mrf.mxu0
  %1291 = vmatprep.mubr.f32.mxu0 0.0
  %1292 = vmatmul.mubr.f32.gmra.mxu0 %v1076
  %v1293 = vpop.f32.mrf.mxu0
  %v1294 = vadd.f32 0.0, %v1293
  %v1295 = vpop.f32.mrf.mxu0
  %1296 = vmatprep.mubr.f32.mxu0 0.0
  %1297 = vmatmul.mubr.f32.gmra.mxu0 %v1079
  %v1298 = vpop.f32.mrf.mxu0
  %v1299 = vadd.f32 0.0, %v1298
  %v1300 = vpop.f32.mrf.mxu0
  %1301 = vmatprep.mubr.f32.mxu0 0.0
  %1302 = vmatmul.mubr.f32.gmra.mxu0 %v1082
  %v1303 = vpop.f32.mrf.mxu0
  %v1304 = vadd.f32 0.0, %v1303
  %v1305 = vpop.f32.mrf.mxu0
  %1306 = vmatprep.mubr.f32.mxu0 0.0
  %1307 = vmatmul.mubr.f32.gmra.mxu0 %v1085
  %v1308 = vpop.f32.mrf.mxu0
  %v1309 = vadd.f32 0.0, %v1308
  %v1310 = vpop.f32.mrf.mxu0
  %1311 = vdwg.mxu0
  %v1312 = vld [vmem:[%s12] sm:$0xff]
  %v1313 = vld [vmem:[%s12 + $0x8] sm:$0xff]
  %v1314 = vld [vmem:[%s12 + $0x10] sm:$0xff]
  %v1315 = vld [vmem:[%s12 + $0x18] sm:$0xff]
  %v1316 = vld [vmem:[%s12 + $0x20] sm:$0xff]
  %v1317 = vld [vmem:[%s12 + $0x28] sm:$0xff]
  %v1318 = vld [vmem:[%s12 + $0x30] sm:$0xff]
  %v1319 = vld [vmem:[%s12 + $0x38] sm:$0xff]
  %v1320 = vld [vmem:[%s12 + $0x40] sm:$0xff]
  %v1321 = vld [vmem:[%s12 + $0x48] sm:$0xff]
  %v1322 = vld [vmem:[%s12 + $0x50] sm:$0xff]
  %v1323 = vld [vmem:[%s12 + $0x58] sm:$0xff]
  %v1324 = vld [vmem:[%s12 + $0x60] sm:$0xff]
  %v1325 = vld [vmem:[%s12 + $0x68] sm:$0xff]
  %v1326 = vld [vmem:[%s12 + $0x70] sm:$0xff]
  %v1327 = vld [vmem:[%s12 + $0x78] sm:$0xff]
  %v1328 = vld [vmem:[%s12 + $0x80] sm:$0xff]
  %v1329 = vld [vmem:[%s12 + $0x88] sm:$0xff]
  %v1330 = vld [vmem:[%s12 + $0x90] sm:$0xff]
  %v1331 = vld [vmem:[%s12 + $0x98] sm:$0xff]
  %v1332 = vld [vmem:[%s12 + $0xa0] sm:$0xff]
  %v1333 = vld [vmem:[%s12 + $0xa8] sm:$0xff]
  %v1334 = vld [vmem:[%s12 + $0xb0] sm:$0xff]
  %v1335 = vld [vmem:[%s12 + $0xb8] sm:$0xff]
  %v1336 = vld [vmem:[%s12 + $0xc0] sm:$0xff]
  %v1337 = vld [vmem:[%s12 + $0xc8] sm:$0xff]
  %v1338 = vld [vmem:[%s12 + $0xd0] sm:$0xff]
  %v1339 = vld [vmem:[%s12 + $0xd8] sm:$0xff]
  %v1340 = vld [vmem:[%s12 + $0xe0] sm:$0xff]
  %v1341 = vld [vmem:[%s12 + $0xe8] sm:$0xff]
  %v1342 = vld [vmem:[%s12 + $0xf0] sm:$0xff]
  %v1343 = vld [vmem:[%s12 + $0xf8] sm:$0xff]
  %v1344 = vmul.f32 %v1154, %v1312
  %v1345 = vmul.f32 %v1159, %v1313
  %v1346 = vmul.f32 %v1164, %v1314
  %v1347 = vmul.f32 %v1169, %v1315
  %v1348 = vmul.f32 %v1174, %v1316
  %v1349 = vmul.f32 %v1179, %v1317
  %v1350 = vmul.f32 %v1184, %v1318
  %v1351 = vmul.f32 %v1189, %v1319
  %v1352 = vmul.f32 %v1194, %v1320
  %v1353 = vmul.f32 %v1199, %v1321
  %v1354 = vmul.f32 %v1204, %v1322
  %v1355 = vmul.f32 %v1209, %v1323
  %v1356 = vmul.f32 %v1214, %v1324
  %v1357 = vmul.f32 %v1219, %v1325
  %v1358 = vmul.f32 %v1224, %v1326
  %v1359 = vmul.f32 %v1229, %v1327
  %v1360 = vmul.f32 %v1234, %v1328
  %v1361 = vmul.f32 %v1239, %v1329
  %v1362 = vmul.f32 %v1244, %v1330
  %v1363 = vmul.f32 %v1249, %v1331
  %v1364 = vmul.f32 %v1254, %v1332
  %v1365 = vmul.f32 %v1259, %v1333
  %v1366 = vmul.f32 %v1264, %v1334
  %v1367 = vmul.f32 %v1269, %v1335
  %v1368 = vmul.f32 %v1274, %v1336
  %v1369 = vmul.f32 %v1279, %v1337
  %v1370 = vmul.f32 %v1284, %v1338
  %v1371 = vmul.f32 %v1289, %v1339
  %v1372 = vmul.f32 %v1294, %v1340
  %v1373 = vmul.f32 %v1299, %v1341
  %v1374 = vmul.f32 %v1304, %v1342
  %v1375 = vmul.f32 %v1309, %v1343
  %v1376 = vld [vmem:[%s13] sm:$0xff]
  %v1377 = vld [vmem:[%s13 + $0x8] sm:$0xff]
  %v1378 = vld [vmem:[%s13 + $0x10] sm:$0xff]
  %v1379 = vld [vmem:[%s13 + $0x18] sm:$0xff]
  %vm1380 = vcmask 261120
  %v1382 = vsel %vm1380, %v1344, 0
  %v1385 = vsel %vm1380, %v1345, 0
  %v1388 = vsel %vm1380, %v1346, 0
  %v1391 = vsel %vm1380, %v1347, 0
  %v1394 = vsel %vm1380, %v1348, 0
  %v1397 = vsel %vm1380, %v1349, 0
  %v1400 = vsel %vm1380, %v1350, 0
  %v1403 = vsel %vm1380, %v1351, 0
  %v1406 = vsel %vm1380, %v1352, 0
  %v1409 = vsel %vm1380, %v1353, 0
  %v1412 = vsel %vm1380, %v1354, 0
  %v1415 = vsel %vm1380, %v1355, 0
  %v1418 = vsel %vm1380, %v1356, 0
  %v1421 = vsel %vm1380, %v1357, 0
  %v1424 = vsel %vm1380, %v1358, 0
  %v1427 = vsel %vm1380, %v1359, 0
  %v1430 = vsel %vm1380, %v1360, 0
  %v1433 = vsel %vm1380, %v1361, 0
  %v1436 = vsel %vm1380, %v1362, 0
  %v1439 = vsel %vm1380, %v1363, 0
  %v1442 = vsel %vm1380, %v1364, 0
  %v1445 = vsel %vm1380, %v1365, 0
  %v1448 = vsel %vm1380, %v1366, 0
  %v1451 = vsel %vm1380, %v1367, 0
  %v1454 = vsel %vm1380, %v1368, 0
  %v1457 = vsel %vm1380, %v1369, 0
  %v1460 = vsel %vm1380, %v1370, 0
  %v1463 = vsel %vm1380, %v1371, 0
  %v1466 = vsel %vm1380, %v1372, 0
  %v1469 = vsel %vm1380, %v1373, 0
  %v1472 = vsel %vm1380, %v1374, 0
  %v1475 = vsel %vm1380, %v1375, 0
  %1477 = vmatprep.subr.mxu0 0.0
  %1478 = vmatpush1.msra.mxu0 0.0
  %1479 = vmatprep.subr.mxu0 0.0
  %1480 = vmatpush1.msra.mxu0 0.0
  %1481 = vmatprep.subr.mxu0 0.0
  %1482 = vmatpush1.msra.mxu0 0.0
  %1483 = vmatprep.subr.mxu0 0.0
  %1484 = vmatpush1.msra.mxu0 0.0
  %1485 = vmatprep.subr.mxu0 0.0
  %1486 = vmatpush1.msra.mxu0 0.0
  %1487 = vmatprep.subr.mxu0 0.0
  %1488 = vmatpush1.msra.mxu0 0.0
  %1489 = vmatprep.subr.mxu0 0.0
  %1490 = vmatpush1.msra.mxu0 0.0
  %1491 = vmatprep.subr.mxu0 0.0
  %1492 = vmatpush1.msra.mxu0 0.0
  %1493 = vmatprep.subr.mxu0 0.0
  %1494 = vmatpush1.msra.mxu0 0.0
  %1495 = vmatprep.subr.mxu0 0.0
  %1496 = vmatpush1.msra.mxu0 0.0
  %1497 = vmatprep.subr.mxu0 0.0
  %1498 = vmatpush1.msra.mxu0 0.0
  %1499 = vmatprep.subr.mxu0 0.0
  %1500 = vmatpush1.msra.mxu0 0.0
  %1501 = vmatprep.subr.mxu0 0.0
  %1502 = vmatpush1.msra.mxu0 %v1379
  %1503 = vmatprep.subr.mxu0 0.0
  %1504 = vmatpush1.msra.mxu0 %v1378
  %1505 = vmatprep.subr.mxu0 0.0
  %1506 = vmatpush1.msra.mxu0 %v1377
  %1507 = vmatprep.subr.mxu0 0.0
  %1508 = vmatpush1.msra.mxu0 %v1376
  %1509 = vmatprep.subr.mxu0 0.0
  %1510 = vmatpush2.msra.mxu0 0.0
  %1511 = vmatprep.subr.mxu0 0.0
  %1512 = vmatpush2.msra.mxu0 0.0
  %1513 = vmatprep.subr.mxu0 0.0
  %1514 = vmatpush2.msra.mxu0 0.0
  %1515 = vmatprep.subr.mxu0 0.0
  %1516 = vmatpush2.msra.mxu0 0.0
  %1517 = vmatprep.subr.mxu0 0.0
  %1518 = vmatpush2.msra.mxu0 0.0
  %1519 = vmatprep.subr.mxu0 0.0
  %1520 = vmatpush2.msra.mxu0 0.0
  %1521 = vmatprep.subr.mxu0 0.0
  %1522 = vmatpush2.msra.mxu0 0.0
  %1523 = vmatprep.subr.mxu0 0.0
  %1524 = vmatpush2.msra.mxu0 0.0
  %1525 = vmatprep.subr.mxu0 0.0
  %1526 = vmatpush2.msra.mxu0 0.0
  %1527 = vmatprep.subr.mxu0 0.0
  %1528 = vmatpush2.msra.mxu0 0.0
  %1529 = vmatprep.subr.mxu0 0.0
  %1530 = vmatpush2.msra.mxu0 0.0
  %1531 = vmatprep.subr.mxu0 0.0
  %1532 = vmatpush2.msra.mxu0 0.0
  %1533 = vmatprep.subr.mxu0 0.0
  %1534 = vmatpush2.msra.mxu0 0.0
  %1535 = vmatprep.subr.mxu0 0.0
  %1536 = vmatpush2.msra.mxu0 0.0
  %1537 = vmatprep.subr.mxu0 0.0
  %1538 = vmatpush2.msra.mxu0 0.0
  %1539 = vmatprep.subr.mxu0 0.0
  %1540 = vmatpush2.msra.mxu0 0.0
  %1541 = vmatprep.mubr.f32.mxu0 0.0
  %1542 = vmatmul.mubr.f32.gmra.mxu0 %v1382
  %v1543 = vpop.f32.mrf.mxu0
  %v1544 = vadd.f32 0.0, %v1543
  %v1545 = vpop.f32.mrf.mxu0
  %1546 = vmatprep.mubr.f32.mxu0 0.0
  %1547 = vmatmul.mubr.f32.gmra.mxu0 %v1385
  %v1548 = vpop.f32.mrf.mxu0
  %v1549 = vadd.f32 0.0, %v1548
  %v1550 = vpop.f32.mrf.mxu0
  %1551 = vmatprep.mubr.f32.mxu0 0.0
  %1552 = vmatmul.mubr.f32.gmra.mxu0 %v1388
  %v1553 = vpop.f32.mrf.mxu0
  %v1554 = vadd.f32 0.0, %v1553
  %v1555 = vpop.f32.mrf.mxu0
  %1556 = vmatprep.mubr.f32.mxu0 0.0
  %1557 = vmatmul.mubr.f32.gmra.mxu0 %v1391
  %v1558 = vpop.f32.mrf.mxu0
  %v1559 = vadd.f32 0.0, %v1558
  %v1560 = vpop.f32.mrf.mxu0
  %1561 = vmatprep.mubr.f32.mxu0 0.0
  %1562 = vmatmul.mubr.f32.gmra.mxu0 %v1394
  %v1563 = vpop.f32.mrf.mxu0
  %v1564 = vadd.f32 0.0, %v1563
  %v1565 = vpop.f32.mrf.mxu0
  %1566 = vmatprep.mubr.f32.mxu0 0.0
  %1567 = vmatmul.mubr.f32.gmra.mxu0 %v1397
  %v1568 = vpop.f32.mrf.mxu0
  %v1569 = vadd.f32 0.0, %v1568
  %v1570 = vpop.f32.mrf.mxu0
  %1571 = vmatprep.mubr.f32.mxu0 0.0
  %1572 = vmatmul.mubr.f32.gmra.mxu0 %v1400
  %v1573 = vpop.f32.mrf.mxu0
  %v1574 = vadd.f32 0.0, %v1573
  %v1575 = vpop.f32.mrf.mxu0
  %1576 = vmatprep.mubr.f32.mxu0 0.0
  %1577 = vmatmul.mubr.f32.gmra.mxu0 %v1403
  %v1578 = vpop.f32.mrf.mxu0
  %v1579 = vadd.f32 0.0, %v1578
  %v1580 = vpop.f32.mrf.mxu0
  %1581 = vmatprep.mubr.f32.mxu0 0.0
  %1582 = vmatmul.mubr.f32.gmra.mxu0 %v1406
  %v1583 = vpop.f32.mrf.mxu0
  %v1584 = vadd.f32 0.0, %v1583
  %v1585 = vpop.f32.mrf.mxu0
  %1586 = vmatprep.mubr.f32.mxu0 0.0
  %1587 = vmatmul.mubr.f32.gmra.mxu0 %v1409
  %v1588 = vpop.f32.mrf.mxu0
  %v1589 = vadd.f32 0.0, %v1588
  %v1590 = vpop.f32.mrf.mxu0
  %1591 = vmatprep.mubr.f32.mxu0 0.0
  %1592 = vmatmul.mubr.f32.gmra.mxu0 %v1412
  %v1593 = vpop.f32.mrf.mxu0
  %v1594 = vadd.f32 0.0, %v1593
  %v1595 = vpop.f32.mrf.mxu0
  %1596 = vmatprep.mubr.f32.mxu0 0.0
  %1597 = vmatmul.mubr.f32.gmra.mxu0 %v1415
  %v1598 = vpop.f32.mrf.mxu0
  %v1599 = vadd.f32 0.0, %v1598
  %v1600 = vpop.f32.mrf.mxu0
  %1601 = vmatprep.mubr.f32.mxu0 0.0
  %1602 = vmatmul.mubr.f32.gmra.mxu0 %v1418
  %v1603 = vpop.f32.mrf.mxu0
  %v1604 = vadd.f32 0.0, %v1603
  %v1605 = vpop.f32.mrf.mxu0
  %1606 = vmatprep.mubr.f32.mxu0 0.0
  %1607 = vmatmul.mubr.f32.gmra.mxu0 %v1421
  %v1608 = vpop.f32.mrf.mxu0
  %v1609 = vadd.f32 0.0, %v1608
  %v1610 = vpop.f32.mrf.mxu0
  %1611 = vmatprep.mubr.f32.mxu0 0.0
  %1612 = vmatmul.mubr.f32.gmra.mxu0 %v1424
  %v1613 = vpop.f32.mrf.mxu0
  %v1614 = vadd.f32 0.0, %v1613
  %v1615 = vpop.f32.mrf.mxu0
  %1616 = vmatprep.mubr.f32.mxu0 0.0
  %1617 = vmatmul.mubr.f32.gmra.mxu0 %v1427
  %v1618 = vpop.f32.mrf.mxu0
  %v1619 = vadd.f32 0.0, %v1618
  %v1620 = vpop.f32.mrf.mxu0
  %1621 = vmatprep.mubr.f32.mxu0 0.0
  %1622 = vmatmul.mubr.f32.gmra.mxu0 %v1430
  %v1623 = vpop.f32.mrf.mxu0
  %v1624 = vadd.f32 0.0, %v1623
  %v1625 = vpop.f32.mrf.mxu0
  %1626 = vmatprep.mubr.f32.mxu0 0.0
  %1627 = vmatmul.mubr.f32.gmra.mxu0 %v1433
  %v1628 = vpop.f32.mrf.mxu0
  %v1629 = vadd.f32 0.0, %v1628
  %v1630 = vpop.f32.mrf.mxu0
  %1631 = vmatprep.mubr.f32.mxu0 0.0
  %1632 = vmatmul.mubr.f32.gmra.mxu0 %v1436
  %v1633 = vpop.f32.mrf.mxu0
  %v1634 = vadd.f32 0.0, %v1633
  %v1635 = vpop.f32.mrf.mxu0
  %1636 = vmatprep.mubr.f32.mxu0 0.0
  %1637 = vmatmul.mubr.f32.gmra.mxu0 %v1439
  %v1638 = vpop.f32.mrf.mxu0
  %v1639 = vadd.f32 0.0, %v1638
  %v1640 = vpop.f32.mrf.mxu0
  %1641 = vmatprep.mubr.f32.mxu0 0.0
  %1642 = vmatmul.mubr.f32.gmra.mxu0 %v1442
  %v1643 = vpop.f32.mrf.mxu0
  %v1644 = vadd.f32 0.0, %v1643
  %v1645 = vpop.f32.mrf.mxu0
  %1646 = vmatprep.mubr.f32.mxu0 0.0
  %1647 = vmatmul.mubr.f32.gmra.mxu0 %v1445
  %v1648 = vpop.f32.mrf.mxu0
  %v1649 = vadd.f32 0.0, %v1648
  %v1650 = vpop.f32.mrf.mxu0
  %1651 = vmatprep.mubr.f32.mxu0 0.0
  %1652 = vmatmul.mubr.f32.gmra.mxu0 %v1448
  %v1653 = vpop.f32.mrf.mxu0
  %v1654 = vadd.f32 0.0, %v1653
  %v1655 = vpop.f32.mrf.mxu0
  %1656 = vmatprep.mubr.f32.mxu0 0.0
  %1657 = vmatmul.mubr.f32.gmra.mxu0 %v1451
  %v1658 = vpop.f32.mrf.mxu0
  %v1659 = vadd.f32 0.0, %v1658
  %v1660 = vpop.f32.mrf.mxu0
  %1661 = vmatprep.mubr.f32.mxu0 0.0
  %1662 = vmatmul.mubr.f32.gmra.mxu0 %v1454
  %v1663 = vpop.f32.mrf.mxu0
  %v1664 = vadd.f32 0.0, %v1663
  %v1665 = vpop.f32.mrf.mxu0
  %1666 = vmatprep.mubr.f32.mxu0 0.0
  %1667 = vmatmul.mubr.f32.gmra.mxu0 %v1457
  %v1668 = vpop.f32.mrf.mxu0
  %v1669 = vadd.f32 0.0, %v1668
  %v1670 = vpop.f32.mrf.mxu0
  %1671 = vmatprep.mubr.f32.mxu0 0.0
  %1672 = vmatmul.mubr.f32.gmra.mxu0 %v1460
  %v1673 = vpop.f32.mrf.mxu0
  %v1674 = vadd.f32 0.0, %v1673
  %v1675 = vpop.f32.mrf.mxu0
  %1676 = vmatprep.mubr.f32.mxu0 0.0
  %1677 = vmatmul.mubr.f32.gmra.mxu0 %v1463
  %v1678 = vpop.f32.mrf.mxu0
  %v1679 = vadd.f32 0.0, %v1678
  %v1680 = vpop.f32.mrf.mxu0
  %1681 = vmatprep.mubr.f32.mxu0 0.0
  %1682 = vmatmul.mubr.f32.gmra.mxu0 %v1466
  %v1683 = vpop.f32.mrf.mxu0
  %v1684 = vadd.f32 0.0, %v1683
  %v1685 = vpop.f32.mrf.mxu0
  %1686 = vmatprep.mubr.f32.mxu0 0.0
  %1687 = vmatmul.mubr.f32.gmra.mxu0 %v1469
  %v1688 = vpop.f32.mrf.mxu0
  %v1689 = vadd.f32 0.0, %v1688
  %v1690 = vpop.f32.mrf.mxu0
  %1691 = vmatprep.mubr.f32.mxu0 0.0
  %1692 = vmatmul.mubr.f32.gmra.mxu0 %v1472
  %v1693 = vpop.f32.mrf.mxu0
  %v1694 = vadd.f32 0.0, %v1693
  %v1695 = vpop.f32.mrf.mxu0
  %1696 = vmatprep.mubr.f32.mxu0 0.0
  %1697 = vmatmul.mubr.f32.gmra.mxu0 %v1475
  %v1698 = vpop.f32.mrf.mxu0
  %v1699 = vadd.f32 0.0, %v1698
  %v1700 = vpop.f32.mrf.mxu0
  %1701 = vdwg.mxu0
  %v1702 = vld [vmem:[%s5] sm:$0xff]
  %v1703 = vld [vmem:[%s5 + $0x8] sm:$0xff]
  %v1704 = vld [vmem:[%s5 + $0x10] sm:$0xff]
  %v1705 = vld [vmem:[%s5 + $0x18] sm:$0xff]
  %v1706 = vld [vmem:[%s5 + $0x20] sm:$0xff]
  %v1707 = vld [vmem:[%s5 + $0x28] sm:$0xff]
  %v1708 = vld [vmem:[%s5 + $0x30] sm:$0xff]
  %v1709 = vld [vmem:[%s5 + $0x38] sm:$0xff]
  %v1710 = vld [vmem:[%s5 + $0x40] sm:$0xff]
  %v1711 = vld [vmem:[%s5 + $0x48] sm:$0xff]
  %v1712 = vld [vmem:[%s5 + $0x50] sm:$0xff]
  %v1713 = vld [vmem:[%s5 + $0x58] sm:$0xff]
  %v1714 = vld [vmem:[%s5 + $0x60] sm:$0xff]
  %v1715 = vld [vmem:[%s5 + $0x68] sm:$0xff]
  %v1716 = vld [vmem:[%s5 + $0x70] sm:$0xff]
  %v1717 = vld [vmem:[%s5 + $0x78] sm:$0xff]
  %v1718 = vld [vmem:[%s5 + $0x80] sm:$0xff]
  %v1719 = vld [vmem:[%s5 + $0x88] sm:$0xff]
  %v1720 = vld [vmem:[%s5 + $0x90] sm:$0xff]
  %v1721 = vld [vmem:[%s5 + $0x98] sm:$0xff]
  %v1722 = vld [vmem:[%s5 + $0xa0] sm:$0xff]
  %v1723 = vld [vmem:[%s5 + $0xa8] sm:$0xff]
  %v1724 = vld [vmem:[%s5 + $0xb0] sm:$0xff]
  %v1725 = vld [vmem:[%s5 + $0xb8] sm:$0xff]
  %v1726 = vld [vmem:[%s5 + $0xc0] sm:$0xff]
  %v1727 = vld [vmem:[%s5 + $0xc8] sm:$0xff]
  %v1728 = vld [vmem:[%s5 + $0xd0] sm:$0xff]
  %v1729 = vld [vmem:[%s5 + $0xd8] sm:$0xff]
  %v1730 = vld [vmem:[%s5 + $0xe0] sm:$0xff]
  %v1731 = vld [vmem:[%s5 + $0xe8] sm:$0xff]
  %v1732 = vld [vmem:[%s5 + $0xf0] sm:$0xff]
  %v1733 = vld [vmem:[%s5 + $0xf8] sm:$0xff]
  %v1734 = vld [vmem:[%s6] sm:$0xff]
  %v1735 = vld [vmem:[%s6 + $0x8] sm:$0xff]
  %v1736 = vld [vmem:[%s6 + $0x10] sm:$0xff]
  %v1737 = vld [vmem:[%s6 + $0x18] sm:$0xff]
  %v1738 = vld [vmem:[%s6 + $0x20] sm:$0xff]
  %v1739 = vld [vmem:[%s6 + $0x28] sm:$0xff]
  %v1740 = vld [vmem:[%s6 + $0x30] sm:$0xff]
  %v1741 = vld [vmem:[%s6 + $0x38] sm:$0xff]
  %v1742 = vld [vmem:[%s6 + $0x40] sm:$0xff]
  %v1743 = vld [vmem:[%s6 + $0x48] sm:$0xff]
  %v1744 = vld [vmem:[%s6 + $0x50] sm:$0xff]
  %v1745 = vld [vmem:[%s6 + $0x58] sm:$0xff]
  %v1746 = vld [vmem:[%s6 + $0x60] sm:$0xff]
  %v1747 = vld [vmem:[%s6 + $0x68] sm:$0xff]
  %v1748 = vld [vmem:[%s6 + $0x70] sm:$0xff]
  %v1749 = vld [vmem:[%s6 + $0x78] sm:$0xff]
  %1751 = vset.pattern.permute.xlu0 0
  %1752 = vperm.xlu0 %1751, %v1734
  %v1753 = vpop.permute.xlu0 %1752
  %1756 = vset.pattern.permute.xlu0 0
  %1757 = vperm.xlu0 %1756, %v1735
  %v1758 = vpop.permute.xlu0 %1757
  %1761 = vset.pattern.permute.xlu0 0
  %1762 = vperm.xlu0 %1761, %v1736
  %v1763 = vpop.permute.xlu0 %1762
  %1766 = vset.pattern.permute.xlu0 0
  %1767 = vperm.xlu0 %1766, %v1737
  %v1768 = vpop.permute.xlu0 %1767
  %1771 = vset.pattern.permute.xlu0 0
  %1772 = vperm.xlu0 %1771, %v1738
  %v1773 = vpop.permute.xlu0 %1772
  %1776 = vset.pattern.permute.xlu0 0
  %1777 = vperm.xlu0 %1776, %v1739
  %v1778 = vpop.permute.xlu0 %1777
  %1781 = vset.pattern.permute.xlu0 0
  %1782 = vperm.xlu0 %1781, %v1740
  %v1783 = vpop.permute.xlu0 %1782
  %1786 = vset.pattern.permute.xlu0 0
  %1787 = vperm.xlu0 %1786, %v1741
  %v1788 = vpop.permute.xlu0 %1787
  %1791 = vset.pattern.permute.xlu0 0
  %1792 = vperm.xlu0 %1791, %v1742
  %v1793 = vpop.permute.xlu0 %1792
  %1796 = vset.pattern.permute.xlu0 0
  %1797 = vperm.xlu0 %1796, %v1743
  %v1798 = vpop.permute.xlu0 %1797
  %1801 = vset.pattern.permute.xlu0 0
  %1802 = vperm.xlu0 %1801, %v1744
  %v1803 = vpop.permute.xlu0 %1802
  %1806 = vset.pattern.permute.xlu0 0
  %1807 = vperm.xlu0 %1806, %v1745
  %v1808 = vpop.permute.xlu0 %1807
  %1811 = vset.pattern.permute.xlu0 0
  %1812 = vperm.xlu0 %1811, %v1746
  %v1813 = vpop.permute.xlu0 %1812
  %1816 = vset.pattern.permute.xlu0 0
  %1817 = vperm.xlu0 %1816, %v1747
  %v1818 = vpop.permute.xlu0 %1817
  %1821 = vset.pattern.permute.xlu0 0
  %1822 = vperm.xlu0 %1821, %v1748
  %v1823 = vpop.permute.xlu0 %1822
  %1826 = vset.pattern.permute.xlu0 0
  %1827 = vperm.xlu0 %1826, %v1749
  %v1828 = vpop.permute.xlu0 %1827
  %1830 = vmatprep.subr.mxu0 0.0
  %1831 = vmatpush1.msra.mxu0 %v1619
  %1832 = vmatprep.subr.mxu0 0.0
  %1833 = vmatpush1.msra.mxu0 %v1614
  %1834 = vmatprep.subr.mxu0 0.0
  %1835 = vmatpush1.msra.mxu0 %v1609
  %1836 = vmatprep.subr.mxu0 0.0
  %1837 = vmatpush1.msra.mxu0 %v1604
  %1838 = vmatprep.subr.mxu0 0.0
  %1839 = vmatpush1.msra.mxu0 %v1599
  %1840 = vmatprep.subr.mxu0 0.0
  %1841 = vmatpush1.msra.mxu0 %v1594
  %1842 = vmatprep.subr.mxu0 0.0
  %1843 = vmatpush1.msra.mxu0 %v1589
  %1844 = vmatprep.subr.mxu0 0.0
  %1845 = vmatpush1.msra.mxu0 %v1584
  %1846 = vmatprep.subr.mxu0 0.0
  %1847 = vmatpush1.msra.mxu0 %v1579
  %1848 = vmatprep.subr.mxu0 0.0
  %1849 = vmatpush1.msra.mxu0 %v1574
  %1850 = vmatprep.subr.mxu0 0.0
  %1851 = vmatpush1.msra.mxu0 %v1569
  %1852 = vmatprep.subr.mxu0 0.0
  %1853 = vmatpush1.msra.mxu0 %v1564
  %1854 = vmatprep.subr.mxu0 0.0
  %1855 = vmatpush1.msra.mxu0 %v1559
  %1856 = vmatprep.subr.mxu0 0.0
  %1857 = vmatpush1.msra.mxu0 %v1554
  %1858 = vmatprep.subr.mxu0 0.0
  %1859 = vmatpush1.msra.mxu0 %v1549
  %1860 = vmatprep.subr.mxu0 0.0
  %1861 = vmatpush1.msra.mxu0 %v1544
  %1862 = vmatprep.subr.mxu0 0.0
  %1863 = vmatpush2.msra.mxu0 %v1699
  %1864 = vmatprep.subr.mxu0 0.0
  %1865 = vmatpush2.msra.mxu0 %v1694
  %1866 = vmatprep.subr.mxu0 0.0
  %1867 = vmatpush2.msra.mxu0 %v1689
  %1868 = vmatprep.subr.mxu0 0.0
  %1869 = vmatpush2.msra.mxu0 %v1684
  %1870 = vmatprep.subr.mxu0 0.0
  %1871 = vmatpush2.msra.mxu0 %v1679
  %1872 = vmatprep.subr.mxu0 0.0
  %1873 = vmatpush2.msra.mxu0 %v1674
  %1874 = vmatprep.subr.mxu0 0.0
  %1875 = vmatpush2.msra.mxu0 %v1669
  %1876 = vmatprep.subr.mxu0 0.0
  %1877 = vmatpush2.msra.mxu0 %v1664
  %1878 = vmatprep.subr.mxu0 0.0
  %1879 = vmatpush2.msra.mxu0 %v1659
  %1880 = vmatprep.subr.mxu0 0.0
  %1881 = vmatpush2.msra.mxu0 %v1654
  %1882 = vmatprep.subr.mxu0 0.0
  %1883 = vmatpush2.msra.mxu0 %v1649
  %1884 = vmatprep.subr.mxu0 0.0
  %1885 = vmatpush2.msra.mxu0 %v1644
  %1886 = vmatprep.subr.mxu0 0.0
  %1887 = vmatpush2.msra.mxu0 %v1639
  %1888 = vmatprep.subr.mxu0 0.0
  %1889 = vmatpush2.msra.mxu0 %v1634
  %1890 = vmatprep.subr.mxu0 0.0
  %1891 = vmatpush2.msra.mxu0 %v1629
  %1892 = vmatprep.subr.mxu0 0.0
  %1893 = vmatpush2.msra.mxu0 %v1624
  %1894 = vmatprep.mubr.f32.mxu0 %v1703
  %1895 = vmatmul.mubr.f32.gmra.mxu0 %v1702
  %v1896 = vpop.f32.mrf.mxu0
  %v1897 = vadd.f32 %v1753, %v1896
  %v1898 = vpop.f32.mrf.mxu0
  %1899 = vmatprep.mubr.f32.mxu0 %v1705
  %1900 = vmatmul.mubr.f32.gmra.mxu0 %v1704
  %v1901 = vpop.f32.mrf.mxu0
  %v1902 = vadd.f32 %v1758, %v1901
  %v1903 = vpop.f32.mrf.mxu0
  %1904 = vmatprep.mubr.f32.mxu0 %v1707
  %1905 = vmatmul.mubr.f32.gmra.mxu0 %v1706
  %v1906 = vpop.f32.mrf.mxu0
  %v1907 = vadd.f32 %v1763, %v1906
  %v1908 = vpop.f32.mrf.mxu0
  %1909 = vmatprep.mubr.f32.mxu0 %v1709
  %1910 = vmatmul.mubr.f32.gmra.mxu0 %v1708
  %v1911 = vpop.f32.mrf.mxu0
  %v1912 = vadd.f32 %v1768, %v1911
  %v1913 = vpop.f32.mrf.mxu0
  %1914 = vmatprep.mubr.f32.mxu0 %v1711
  %1915 = vmatmul.mubr.f32.gmra.mxu0 %v1710
  %v1916 = vpop.f32.mrf.mxu0
  %v1917 = vadd.f32 %v1773, %v1916
  %v1918 = vpop.f32.mrf.mxu0
  %1919 = vmatprep.mubr.f32.mxu0 %v1713
  %1920 = vmatmul.mubr.f32.gmra.mxu0 %v1712
  %v1921 = vpop.f32.mrf.mxu0
  %v1922 = vadd.f32 %v1778, %v1921
  %v1923 = vpop.f32.mrf.mxu0
  %1924 = vmatprep.mubr.f32.mxu0 %v1715
  %1925 = vmatmul.mubr.f32.gmra.mxu0 %v1714
  %v1926 = vpop.f32.mrf.mxu0
  %v1927 = vadd.f32 %v1783, %v1926
  %v1928 = vpop.f32.mrf.mxu0
  %1929 = vmatprep.mubr.f32.mxu0 %v1717
  %1930 = vmatmul.mubr.f32.gmra.mxu0 %v1716
  %v1931 = vpop.f32.mrf.mxu0
  %v1932 = vadd.f32 %v1788, %v1931
  %v1933 = vpop.f32.mrf.mxu0
  %1934 = vmatprep.mubr.f32.mxu0 %v1719
  %1935 = vmatmul.mubr.f32.gmra.mxu0 %v1718
  %v1936 = vpop.f32.mrf.mxu0
  %v1937 = vadd.f32 %v1793, %v1936
  %v1938 = vpop.f32.mrf.mxu0
  %1939 = vmatprep.mubr.f32.mxu0 %v1721
  %1940 = vmatmul.mubr.f32.gmra.mxu0 %v1720
  %v1941 = vpop.f32.mrf.mxu0
  %v1942 = vadd.f32 %v1798, %v1941
  %v1943 = vpop.f32.mrf.mxu0
  %1944 = vmatprep.mubr.f32.mxu0 %v1723
  %1945 = vmatmul.mubr.f32.gmra.mxu0 %v1722
  %v1946 = vpop.f32.mrf.mxu0
  %v1947 = vadd.f32 %v1803, %v1946
  %v1948 = vpop.f32.mrf.mxu0
  %1949 = vmatprep.mubr.f32.mxu0 %v1725
  %1950 = vmatmul.mubr.f32.gmra.mxu0 %v1724
  %v1951 = vpop.f32.mrf.mxu0
  %v1952 = vadd.f32 %v1808, %v1951
  %v1953 = vpop.f32.mrf.mxu0
  %1954 = vmatprep.mubr.f32.mxu0 %v1727
  %1955 = vmatmul.mubr.f32.gmra.mxu0 %v1726
  %v1956 = vpop.f32.mrf.mxu0
  %v1957 = vadd.f32 %v1813, %v1956
  %v1958 = vpop.f32.mrf.mxu0
  %1959 = vmatprep.mubr.f32.mxu0 %v1729
  %1960 = vmatmul.mubr.f32.gmra.mxu0 %v1728
  %v1961 = vpop.f32.mrf.mxu0
  %v1962 = vadd.f32 %v1818, %v1961
  %v1963 = vpop.f32.mrf.mxu0
  %1964 = vmatprep.mubr.f32.mxu0 %v1731
  %1965 = vmatmul.mubr.f32.gmra.mxu0 %v1730
  %v1966 = vpop.f32.mrf.mxu0
  %v1967 = vadd.f32 %v1823, %v1966
  %v1968 = vpop.f32.mrf.mxu0
  %1969 = vmatprep.mubr.f32.mxu0 %v1733
  %1970 = vmatmul.mubr.f32.gmra.mxu0 %v1732
  %v1971 = vpop.f32.mrf.mxu0
  %v1972 = vadd.f32 %v1828, %v1971
  %v1973 = vpop.f32.mrf.mxu0
  %1974 = vdwg.mxu0
  %vm1975 = vcmask 15360
  %1976 = vst.msk [vmem:[%s15] sm:$0xff] %vm1975, %v1897
  %1977 = vst.msk [vmem:[%s15 + $0x8] sm:$0xff] %vm1975, %v1902
  %1978 = vst.msk [vmem:[%s15 + $0x10] sm:$0xff] %vm1975, %v1907
  %1979 = vst.msk [vmem:[%s15 + $0x18] sm:$0xff] %vm1975, %v1912
  %1980 = vst.msk [vmem:[%s15 + $0x20] sm:$0xff] %vm1975, %v1917
  %1981 = vst.msk [vmem:[%s15 + $0x28] sm:$0xff] %vm1975, %v1922
  %1982 = vst.msk [vmem:[%s15 + $0x30] sm:$0xff] %vm1975, %v1927
  %1983 = vst.msk [vmem:[%s15 + $0x38] sm:$0xff] %vm1975, %v1932
  %1984 = vst.msk [vmem:[%s15 + $0x40] sm:$0xff] %vm1975, %v1937
  %1985 = vst.msk [vmem:[%s15 + $0x48] sm:$0xff] %vm1975, %v1942
  %1986 = vst.msk [vmem:[%s15 + $0x50] sm:$0xff] %vm1975, %v1947
  %1987 = vst.msk [vmem:[%s15 + $0x58] sm:$0xff] %vm1975, %v1952
  %1988 = vst.msk [vmem:[%s15 + $0x60] sm:$0xff] %vm1975, %v1957
  %1989 = vst.msk [vmem:[%s15 + $0x68] sm:$0xff] %vm1975, %v1962
  %1990 = vst.msk [vmem:[%s15 + $0x70] sm:$0xff] %vm1975, %v1967
  %1991 = vst.msk [vmem:[%s15 + $0x78] sm:$0xff] %vm1975, %v1972
  // Predicated region
  $region58: #{forward.1} parent=0 // pred_check
    _
  $region59: #{forward.1} parent=0 // pred_check_branch
    %1993 = sbr.rel (0) target = $region61
  $region60: #{forward.1} parent=0 // pred_region
    _
  $region61: #{forward.1} parent=0 // pred_fallthru
    _
  // Predicated region
  $region62: #{forward.1} parent=0 // pred_check
    _
  $region63: #{forward.1} parent=0 // pred_check_branch
    %1995 = sbr.rel (0) target = $region65
  $region64: #{forward.1} parent=0 // pred_region
    _
  $region65: #{forward.1} parent=0 // pred_fallthru
    _
  // Predicated region
  $region66: #{forward.1} parent=0 // pred_check
    _
  $region67: #{forward.1} parent=0 // pred_check_branch
    %1997 = sbr.rel (0) target = $region69
  $region68: #{forward.1} parent=0 // pred_region
    _
  $region69: #{forward.1} parent=0 // pred_fallthru
    _
  // Predicated region
  $region70: #{forward.1} parent=0 // pred_check
    _
  $region71: #{forward.1} parent=0 // pred_check_branch
    %1999 = sbr.rel (0) target = $region73
  $region72: #{forward.1} parent=0 // pred_region
    _
  $region73: #{forward.1} parent=0 // pred_fallthru
    _

</llo_original>
